<compile_context>
chip_gen: v5e
topology: v5e:2x2
jax: 0.10.0
libtpu: 0.0.40
codegen_flags: <defaults>
</compile_context>

<pallas_src>
import jax
import jax.numpy as jnp
from jax import lax
from jax.experimental import pallas as pl
from jax.experimental.pallas import tpu as pltpu


# ----------------------------- slab layout helpers ---------------------------

def _seg(n):
    """Round a row count up to a sublane tile (8 rows) so slab slices stay aligned."""
    return -(-n // 8) * 8


def _slab_offsets(D, H, Hd, P):
    offs_a, off = {}, 0
    for name, rows in (("wei", D), ("weh", H), ("be", 1), ("wc", H), ("wo", Hd), ("bo", 1)):
        offs_a[name] = off
        off += _seg(rows)
    offs_a["rows"] = off
    offs_b, off = {}, 0
    for name, rows in (("wdh_att", Hd), ("w_pre", P), ("b_pre", 1)):
        offs_b[name] = off
        off += _seg(rows)
    offs_b["rows"] = off
    return offs_a, offs_b


# ----------------------------- kernel ----------------------------------------

def make_kernel(S, D, M, H, Hd, P, T, NPp, offs_a, offs_b, eps=1e-5):
    """S=seq_len, D=encoder in dim, M=batch, H=enc hidden, Hd=dec hidden,
    P=len(supercomput_index), T=pred_len, NPp=padded output lanes."""
    H3, H4 = 3 * H, 4 * H
    Hd3, Hd4 = 3 * Hd, 4 * Hd

    def kernel(x_ref, pm_ref, hc_ref, bn_ref, wa_ref, wb_ref, out_ref, dec_scr):
        # ---- BatchNorm1d(seq_len), training-mode batch stats, vectorized over S ----
        # TODO(synk): eval-mode BN (running_mean/running_var) not modeled.
        x = x_ref[...]                                              # [S, M, D]
        inv_n = 1.0 / float(M * D)
        mu = jnp.sum(jnp.sum(x, axis=2, keepdims=True), axis=1, keepdims=True) * inv_n
        xc = x - mu
        var = jnp.sum(jnp.sum(xc * xc, axis=2, keepdims=True), axis=1, keepdims=True) * inv_n
        gamma = bn_ref[:, :, 0:1]                                   # [S, 1, 1]
        beta = bn_ref[:, :, 1:2]
        xn = gamma * lax.rsqrt(var + eps) * xc + beta               # [S, M, D]

        # ---- hoisted, data-independent matmuls (off the recurrence chains) --------
        wei = wa_ref[offs_a["wei"]:offs_a["wei"] + D, :]            # [D, 4H]
        be = wa_ref[offs_a["be"]:offs_a["be"] + 1, :]               # [1, 4H]
        gx = jnp.dot(xn.reshape(S * M, D), wei,
                     preferred_element_type=jnp.float32) + be       # [S*M, 4H]
        gx3 = gx.reshape(S, M, H4)                                  # aligned per-step reads

        w_pre = wb_ref[offs_b["w_pre"]:offs_b["w_pre"] + P, :]      # [P, 4Hd+S]
        b_pre = wb_ref[offs_b["b_pre"]:offs_b["b_pre"] + 1, :]      # [1, 4Hd+S]
        pre = jnp.dot(pm_ref[...], w_pre,
                      preferred_element_type=jnp.float32) + b_pre   # [T*M, 4Hd+S]
        pre3 = pre.reshape(T, M, Hd4 + S)                           # [gates | logits]

        # ---- encoder LSTM: only h @ W_hh stays on the recurrence chain ------------
        weh = wa_ref[offs_a["weh"]:offs_a["weh"] + H, :]            # resident [H, 4H]
        h = hc_ref[0]                                               # [M, H]
        c = hc_ref[1]                                               # [M, H]
        enc = []
        for s in range(S):
            g4 = gx3[s] + jnp.dot(h, weh, preferred_element_type=jnp.float32)
            sig = jax.nn.sigmoid(g4[:, :H3])                        # gates [i|f|o|g]
            gg = jnp.tanh(g4[:, H3:])
            c = sig[:, H:2 * H] * c + sig[:, :H] * gg
            h = sig[:, 2 * H:H3] * jnp.tanh(c)
            enc.append(h)

        # ---- attention context pre-projected through the fused decoder weight -----
        #   ctx @ wc == sum_s w[m,s] * (E[m,s,:] @ wc)  -> no per-step MXU push for
        #   the context path; EW built once (one-off stack/relayout, off the chain).
        wc = wa_ref[offs_a["wc"]:offs_a["wc"] + H, :]               # [H, 4Hd]
        E = jnp.stack(enc, axis=1)                                  # [M, S, H]
        EW = jnp.dot(E.reshape(M * S, H), wc,
                     preferred_element_type=jnp.float32).reshape(M, S, Hd4)

        # ---- decoder: ONE fused MXU dot per step (hd @ [wdh | wa_h]) --------------
        wdh_att = wb_ref[offs_b["wdh_att"]:offs_b["wdh_att"] + Hd, :]   # [Hd, 4Hd+S]
        hd = h                                                      # decoder init = encoder final
        cd = c
        for t in range(T):
            z = jnp.dot(hd, wdh_att, preferred_element_type=jnp.float32) + pre3[t]
            logits = z[:, Hd4:]                                     # [M, S] (tile-aligned split)
            lmax = jnp.max(logits, axis=-1, keepdims=True)
            e = jnp.exp(logits - lmax)
            w = e * pl.reciprocal(jnp.sum(e, axis=-1, keepdims=True), approx=True)
            ctxw = jnp.sum(w[:, :, None] * EW, axis=1)              # [M, 4Hd]
            g4 = z[:, :Hd4] + ctxw                                  # gates [i|f|o|g]
            sig = jax.nn.sigmoid(g4[:, :Hd3])
            gg = jnp.tanh(g4[:, Hd3:])
            cd = sig[:, Hd:2 * Hd] * cd + sig[:, :Hd] * gg
            hd = sig[:, 2 * Hd:Hd3] * jnp.tanh(cd)
            dec_scr[t] = hd                                         # bounded vreg pressure

        # ---- batched output projection, lane-dense store (NP padded to 4Hd) -------
        wo = wa_ref[offs_a["wo"]:offs_a["wo"] + Hd, :]              # [Hd, NPp]
        bo = wa_ref[offs_a["bo"]:offs_a["bo"] + 1, :]               # [1, NPp]
        hs = dec_scr[...].reshape(T * M, Hd)
        out_ref[...] = jnp.dot(hs, wo, preferred_element_type=jnp.float32) + bo

    return kernel


# ----------------------------- wrapper ----------------------------------------

def _reorder_gates(w, h):
    """Reorder LSTM gate columns [i|f|g|o] -> [i|f|o|g] (last axis is 4*h)."""
    return jnp.concatenate([w[..., :2 * h], w[..., 3 * h:4 * h], w[..., 2 * h:3 * h]],
                           axis=-1)


def _pad_rows(a, rows):
    if a.shape[0] == rows:
        return a
    return jnp.concatenate(
        [a, jnp.zeros((rows - a.shape[0],) + a.shape[1:], a.dtype)], axis=0)


def tsa_forward(x, predict_m, h0, c0, params, *, seq_len, pred_len):
    """x: [M, S, D] (batch-major, like the PyTorch call site); predict_m: [M, T, P].
    Returns [M, T, NP] (module output for batch_first=False)."""
    M, S, D = x.shape
    _, T, P = predict_m.shape
    H = h0.shape[-1]
    Hd = H                       # module requires decoder_hidden_dim == encoder_hidden_dim
    NP = params["wo_t"].shape[-1]
    assert S == seq_len and T == pred_len
    NPp = 4 * Hd                 # pad output lanes -> unmasked full-lane store
    assert NP <= NPp

    f32 = jnp.float32
    # module's _prepare_input_h permute (batch_first=False): glue transposes
    x_t = jnp.transpose(x, (1, 0, 2)).astype(f32)                         # [S, M, D]
    pm2d = jnp.transpose(predict_m, (1, 0, 2)).astype(f32).reshape(T * M, P)
    hc0 = jnp.stack([h0.astype(f32), c0.astype(f32)], axis=0)             # [2, M, H]
    bn_gb = jnp.stack([params["bn_gamma"].astype(f32),
                       params["bn_beta"].astype(f32)], axis=-1).reshape(S, 1, 2)

    # ---- wrapper-side weight plumbing (exact algebra, done once) -----------------
    wei = _reorder_gates(params["we_ih_t"].astype(f32), H)                # [D, 4H]
    weh = _reorder_gates(params["we_hh_t"].astype(f32), H)                # [H, 4H]
    be = _reorder_gates(params["be"].astype(f32), H)                      # [1, 4H]

    # fuse the pre-decoder Linear into the decoder LSTM input weights
    wd_ih = params["wd_ih_t"].astype(f32)                                 # [Hd, 4Hd]
    wfd = _reorder_gates(params["wp_t"].astype(f32) @ wd_ih, Hd)          # [H+P, 4Hd]
    bfd = _reorder_gates(params["bp"].astype(f32) @ wd_ih
                         + params["bd"].astype(f32), Hd)                  # [1, 4Hd]
    wc, wpp = wfd[:H], wfd[H:]
    wdh = _reorder_gates(params["wd_hh_t"].astype(f32), Hd)               # [Hd, 4Hd]

    wa = params["wa_t"].astype(f32)                                       # [H+P, S]
    wa_h, wa_p = wa[:H], wa[H:]
    ba = params["ba"].astype(f32)                                         # [1, S]

    # fused hd-weight [wdh | wa_h] and fused pred-weight [wpp | wa_p] (+ bias)
    wdh_att = jnp.concatenate([wdh, wa_h], axis=1)                        # [Hd, 4Hd+S]
    w_pre = jnp.concatenate([wpp, wa_p], axis=1)                          # [P,  4Hd+S]
    b_pre = jnp.concatenate([bfd, ba], axis=1)                            # [1,  4Hd+S]

    wo_pad = jnp.zeros((Hd, NPp), f32).at[:, :NP].set(params["wo_t"].astype(f32))
    bo_pad = jnp.zeros((1, NPp), f32).at[:, :NP].set(params["bo"].astype(f32))

    # pack small constant operands into two slabs -> ~6 DMAs instead of 18
    offs_a, offs_b = _slab_offsets(D, H, Hd, P)
    slab_a = jnp.concatenate(
        [_pad_rows(wei, _seg(D)), _pad_rows(weh, _seg(H)), _pad_rows(be, _seg(1)),
         _pad_rows(wc, _seg(H)), _pad_rows(wo_pad, _seg(Hd)), _pad_rows(bo_pad, _seg(1))],
        axis=0)                                                           # [rows_a, 4H]
    slab_b = jnp.concatenate(
        [_pad_rows(wdh_att, _seg(Hd)), _pad_rows(w_pre, _seg(P)), _pad_rows(b_pre, _seg(1))],
        axis=0)                                                           # [rows_b, 4Hd+S]
    assert slab_a.shape == (offs_a["rows"], 4 * H)
    assert slab_b.shape == (offs_b["rows"], 4 * Hd + S)

    kernel = make_kernel(S, D, M, H, Hd, P, T, NPp, offs_a, offs_b)

    vspec = pl.BlockSpec(memory_space=pltpu.MemorySpace.VMEM)
    out = pl.pallas_call(
        kernel,
        out_shape=jax.ShapeDtypeStruct((T * M, NPp), f32),
        in_specs=[vspec] * 6,
        out_specs=vspec,
        scratch_shapes=[pltpu.VMEM((T, M, Hd), f32)],
    )(x_t, pm2d, hc0, bn_gb, slab_a, slab_b)

    # [T*M, NPp] -> [T, M, NP] -> final permute(1, 0, 2) from the module
    return out[:, :NP].reshape(T, M, NP).transpose(1, 0, 2)               # [M, T, NP]


# --------------------------- params / main -------------------------------------

def init_params(key, *, S, D, H, Hd, P, NP):
    ks = jax.random.split(key, 16)

    def u(k, shape, fan):
        bound = 1.0 / jnp.sqrt(jnp.float32(fan))
        return jax.random.uniform(k, shape, jnp.float32, -bound, bound)

    return {
        # BatchNorm1d(seq_len): default gamma=1, beta=0
        "bn_gamma": jnp.ones((S,), jnp.float32),
        "bn_beta": jnp.zeros((S,), jnp.float32),
        # encoder LSTM (weights stored transposed for x @ W, gate cols i,f,g,o)
        "we_ih_t": u(ks[0], (D, 4 * H), H),
        "we_hh_t": u(ks[1], (H, 4 * H), H),
        "be": u(ks[2], (1, 4 * H), H) + u(ks[3], (1, 4 * H), H),   # b_ih + b_hh
        # sequenceForAttention: Linear(H*layers*bi + P -> seq_len)
        "wa_t": u(ks[4], (H + P, S), H + P),
        "ba": u(ks[5], (1, S), H + P),
        # sequenceForDecoder: Linear(H + P -> Hd)
        "wp_t": u(ks[6], (H + P, Hd), H + P),
        "bp": u(ks[7], (1, Hd), H + P),
        # decoder LSTM (input size = H*bi = Hd)
        "wd_ih_t": u(ks[8], (Hd, 4 * Hd), Hd),
        "wd_hh_t": u(ks[9], (Hd, 4 * Hd), Hd),
        "bd": u(ks[10], (1, 4 * Hd), Hd) + u(ks[11], (1, 4 * Hd), Hd),
        # sequenceForOut: Linear(Hd*bi -> NP)
        "wo_t": u(ks[12], (Hd, NP), Hd),
        "bo": u(ks[13], (1, NP), Hd),
    }


if __name__ == "__main__":
    # args: seq_len=8, natural_encoder_in_dim=8, encoder_hidden_dim=32,
    # encoder_num_layer=1, bidirectional=False, batch_first=False,
    # len(supercomput_index)=4, decoder_hidden_dim=32, decoder_num_layer=1,
    # len(pred_index)=3, pred_len=4, batch=2
    M, S, D = 2, 8, 8
    H = Hd = 32
    P, NP, T = 4, 3, 4

    key = jax.random.PRNGKey(0)
    k_x, k_pm, k_h, k_c, k_p = jax.random.split(key, 5)

    x = jax.random.normal(k_x, (M, S, D), jnp.float32)           # inputs    [M, S, D]
    predict_m = jax.random.normal(k_pm, (M, T, P), jnp.float32)  # predict_M [M, T, P]
    # _prepare_input_h draws random initial (h, c) via torch.randn -> explicit here
    h0 = jax.random.normal(k_h, (M, H), jnp.float32)
    c0 = jax.random.normal(k_c, (M, H), jnp.float32)

    params = init_params(k_p, S=S, D=D, H=H, Hd=Hd, P=P, NP=NP)

    out = tsa_forward(x, predict_m, h0, c0, params, seq_len=S, pred_len=T)
    out = jax.block_until_ready(out)

    assert out.shape == (M, T, NP), out.shape
    assert bool(jnp.all(jnp.isfinite(out)))
    # TODO(synk): getAttention=True path (host-side Python list of numpy weights) not emitted.
    print("KERNEL_OK")
</pallas_src>

<mosaic_0001>
module attributes {stable_mosaic.version = 11 : i64} {
  func.func @kernel(%arg0: memref<8x2x8xf32, #tpu.memory_space<vmem>>, %arg1: memref<8x4xf32, #tpu.memory_space<vmem>>, %arg2: memref<2x2x32xf32, #tpu.memory_space<vmem>>, %arg3: memref<8x1x2xf32, #tpu.memory_space<vmem>>, %arg4: memref<120x128xf32, #tpu.memory_space<vmem>>, %arg5: memref<48x136xf32, #tpu.memory_space<vmem>>, %arg6: memref<8x128xf32, #tpu.memory_space<vmem>>, %arg7: memref<4x2x32xf32, #tpu.memory_space<vmem>>) attributes {dimension_semantics = [], scalar_prefetch = 0 : i64, scratch_operands = 1 : i64, tpu.core_type = #tpu.core_type<tc>} {
    %c0 = arith.constant 0 : index
    %c0_0 = arith.constant 0 : index
    %c0_1 = arith.constant 0 : index
    %0 = vector.load %arg0[%c0, %c0_0, %c0_1] : memref<8x2x8xf32, #tpu.memory_space<vmem>>, vector<8x2x8xf32>
    %cst = arith.constant dense<0.000000e+00> : vector<8x2xf32>
    %1 = vector.multi_reduction <add>, %0, %cst [2] : vector<8x2x8xf32> to vector<8x2xf32>
    %2 = vector.shape_cast %1 : vector<8x2xf32> to vector<8x2x1xf32>
    %cst_2 = arith.constant dense<0.000000e+00> : vector<8x1xf32>
    %3 = vector.multi_reduction <add>, %2, %cst_2 [1] : vector<8x2x1xf32> to vector<8x1xf32>
    %4 = vector.shape_cast %3 : vector<8x1xf32> to vector<8x1x1xf32>
    %cst_3 = arith.constant 6.250000e-02 : f32
    %5 = vector.broadcast %cst_3 : f32 to vector<8x1x1xf32>
    %6 = arith.mulf %4, %5 : vector<8x1x1xf32>
    %7 = vector.broadcast %6 : vector<8x1x1xf32> to vector<8x2x8xf32>
    %8 = arith.subf %0, %7 : vector<8x2x8xf32>
    %9 = arith.mulf %8, %8 : vector<8x2x8xf32>
    %cst_4 = arith.constant dense<0.000000e+00> : vector<8x2xf32>
    %10 = vector.multi_reduction <add>, %9, %cst_4 [2] : vector<8x2x8xf32> to vector<8x2xf32>
    %11 = vector.shape_cast %10 : vector<8x2xf32> to vector<8x2x1xf32>
    %cst_5 = arith.constant dense<0.000000e+00> : vector<8x1xf32>
    %12 = vector.multi_reduction <add>, %11, %cst_5 [1] : vector<8x2x1xf32> to vector<8x1xf32>
    %13 = vector.shape_cast %12 : vector<8x1xf32> to vector<8x1x1xf32>
    %cst_6 = arith.constant 6.250000e-02 : f32
    %14 = vector.broadcast %cst_6 : f32 to vector<8x1x1xf32>
    %15 = arith.mulf %13, %14 : vector<8x1x1xf32>
    %c0_7 = arith.constant 0 : index
    %c0_8 = arith.constant 0 : index
    %c0_9 = arith.constant 0 : index
    %16 = vector.load %arg3[%c0_7, %c0_8, %c0_9] : memref<8x1x2xf32, #tpu.memory_space<vmem>>, vector<8x1x1xf32>
    %c0_10 = arith.constant 0 : index
    %c0_11 = arith.constant 0 : index
    %c1 = arith.constant 1 : index
    %17 = vector.load %arg3[%c0_10, %c0_11, %c1] : memref<8x1x2xf32, #tpu.memory_space<vmem>>, vector<8x1x1xf32>
    %cst_12 = arith.constant 9.99999974E-6 : f32
    %18 = vector.broadcast %cst_12 : f32 to vector<8x1x1xf32>
    %19 = arith.addf %15, %18 : vector<8x1x1xf32>
    %20 = math.rsqrt %19 : vector<8x1x1xf32>
    %21 = arith.mulf %16, %20 : vector<8x1x1xf32>
    %22 = vector.broadcast %21 : vector<8x1x1xf32> to vector<8x2x8xf32>
    %23 = arith.mulf %22, %8 : vector<8x2x8xf32>
    %24 = vector.broadcast %17 : vector<8x1x1xf32> to vector<8x2x8xf32>
    %25 = arith.addf %23, %24 : vector<8x2x8xf32>
    %c0_13 = arith.constant 0 : index
    %c0_14 = arith.constant 0 : index
    %26 = vector.load %arg4[%c0_13, %c0_14] : memref<120x128xf32, #tpu.memory_space<vmem>>, vector<8x128xf32>
    %c40 = arith.constant 40 : index
    %c0_15 = arith.constant 0 : index
    %27 = vector.load %arg4[%c40, %c0_15] : memref<120x128xf32, #tpu.memory_space<vmem>>, vector<1x128xf32>
    %28 = vector.shape_cast %25 : vector<8x2x8xf32> to vector<16x8xf32>
    %cst_16 = arith.constant dense<0.000000e+00> : vector<16x128xf32>
    %29 = tpu.matmul %28, %26, %cst_16 {dimension_numbers = #tpu.dot_dimension_numbers<[1], [0], [0], [1], [0, 0, 1, 1], [], []>} : vector<16x8xf32>, vector<8x128xf32>, vector<16x128xf32> -> vector<16x128xf32>
    %30 = vector.broadcast %27 : vector<1x128xf32> to vector<16x128xf32>
    %31 = arith.addf %29, %30 : vector<16x128xf32>
    %32 = vector.shape_cast %31 : vector<16x128xf32> to vector<8x2x128xf32>
    %c32 = arith.constant 32 : index
    %c0_17 = arith.constant 0 : index
    %33 = vector.load %arg5[%c32, %c0_17] : memref<48x136xf32, #tpu.memory_space<vmem>>, vector<4x136xf32>
    %c40_18 = arith.constant 40 : index
    %c0_19 = arith.constant 0 : index
    %34 = vector.load %arg5[%c40_18, %c0_19] : memref<48x136xf32, #tpu.memory_space<vmem>>, vector<1x136xf32>
    %c0_20 = arith.constant 0 : index
    %c0_21 = arith.constant 0 : index
    %35 = vector.load %arg1[%c0_20, %c0_21] : memref<8x4xf32, #tpu.memory_space<vmem>>, vector<8x4xf32>
    %cst_22 = arith.constant dense<0.000000e+00> : vector<8x136xf32>
    %36 = tpu.matmul %35, %33, %cst_22 {dimension_numbers = #tpu.dot_dimension_numbers<[1], [0], [0], [1], [0, 0, 1, 1], [], []>} : vector<8x4xf32>, vector<4x136xf32>, vector<8x136xf32> -> vector<8x136xf32>
    %37 = vector.broadcast %34 : vector<1x136xf32> to vector<8x136xf32>
    %38 = arith.addf %36, %37 : vector<8x136xf32>
    %39 = vector.shape_cast %38 : vector<8x136xf32> to vector<4x2x136xf32>
    %c8 = arith.constant 8 : index
    %c0_23 = arith.constant 0 : index
    %40 = vector.load %arg4[%c8, %c0_23] : memref<120x128xf32, #tpu.memory_space<vmem>>, vector<32x128xf32>
    %c0_24 = arith.constant 0 : index
    %c0_25 = arith.constant 0 : index
    %c0_26 = arith.constant 0 : index
    %41 = vector.load %arg2[%c0_24, %c0_25, %c0_26] : memref<2x2x32xf32, #tpu.memory_space<vmem>>, vector<1x2x32xf32>
    %42 = vector.shape_cast %41 : vector<1x2x32xf32> to vector<2x32xf32>
    %c1_27 = arith.constant 1 : index
    %c0_28 = arith.constant 0 : index
    %c0_29 = arith.constant 0 : index
    %43 = vector.load %arg2[%c1_27, %c0_28, %c0_29] : memref<2x2x32xf32, #tpu.memory_space<vmem>>, vector<1x2x32xf32>
    %44 = vector.shape_cast %43 : vector<1x2x32xf32> to vector<2x32xf32>
    %45 = vector.extract_strided_slice %32 {offsets = [0, 0, 0], sizes = [1, 2, 128], strides = [1, 1, 1]} : vector<8x2x128xf32> to vector<1x2x128xf32>
    %46 = vector.shape_cast %45 : vector<1x2x128xf32> to vector<2x128xf32>
    %cst_30 = arith.constant dense<0.000000e+00> : vector<2x128xf32>
    %47 = tpu.matmul %42, %40, %cst_30 {dimension_numbers = #tpu.dot_dimension_numbers<[1], [0], [0], [1], [0, 0, 1, 1], [], []>} : vector<2x32xf32>, vector<32x128xf32>, vector<2x128xf32> -> vector<2x128xf32>
    %48 = arith.addf %46, %47 : vector<2x128xf32>
    %49 = vector.extract_strided_slice %48 {offsets = [0, 0], sizes = [2, 96], strides = [1, 1]} : vector<2x128xf32> to vector<2x96xf32>
    %50 = arith.negf %49 : vector<2x96xf32>
    %51 = math.exp %50 : vector<2x96xf32>
    %cst_31 = arith.constant 1.000000e+00 : f32
    %52 = vector.broadcast %cst_31 : f32 to vector<2x96xf32>
    %53 = arith.addf %52, %51 : vector<2x96xf32>
    %54 = arith.divf %52, %53 : vector<2x96xf32>
    %55 = vector.extract_strided_slice %48 {offsets = [0, 96], sizes = [2, 32], strides = [1, 1]} : vector<2x128xf32> to vector<2x32xf32>
    %56 = math.tanh %55 : vector<2x32xf32>
    %57 = vector.extract_strided_slice %54 {offsets = [0, 32], sizes = [2, 32], strides = [1, 1]} : vector<2x96xf32> to vector<2x32xf32>
    %58 = arith.mulf %57, %44 : vector<2x32xf32>
    %59 = vector.extract_strided_slice %54 {offsets = [0, 0], sizes = [2, 32], strides = [1, 1]} : vector<2x96xf32> to vector<2x32xf32>
    %60 = arith.mulf %59, %56 : vector<2x32xf32>
    %61 = arith.addf %58, %60 : vector<2x32xf32>
    %62 = vector.extract_strided_slice %54 {offsets = [0, 64], sizes = [2, 32], strides = [1, 1]} : vector<2x96xf32> to vector<2x32xf32>
    %63 = math.tanh %61 : vector<2x32xf32>
    %64 = arith.mulf %62, %63 : vector<2x32xf32>
    %65 = vector.extract_strided_slice %32 {offsets = [1, 0, 0], sizes = [1, 2, 128], strides = [1, 1, 1]} : vector<8x2x128xf32> to vector<1x2x128xf32>
    %66 = vector.shape_cast %65 : vector<1x2x128xf32> to vector<2x128xf32>
    %cst_32 = arith.constant dense<0.000000e+00> : vector<2x128xf32>
    %67 = tpu.matmul %64, %40, %cst_32 {dimension_numbers = #tpu.dot_dimension_numbers<[1], [0], [0], [1], [0, 0, 1, 1], [], []>} : vector<2x32xf32>, vector<32x128xf32>, vector<2x128xf32> -> vector<2x128xf32>
    %68 = arith.addf %66, %67 : vector<2x128xf32>
    %69 = vector.extract_strided_slice %68 {offsets = [0, 0], sizes = [2, 96], strides = [1, 1]} : vector<2x128xf32> to vector<2x96xf32>
    %70 = arith.negf %69 : vector<2x96xf32>
    %71 = math.exp %70 : vector<2x96xf32>
    %cst_33 = arith.constant 1.000000e+00 : f32
    %72 = vector.broadcast %cst_33 : f32 to vector<2x96xf32>
    %73 = arith.addf %72, %71 : vector<2x96xf32>
    %74 = arith.divf %72, %73 : vector<2x96xf32>
    %75 = vector.extract_strided_slice %68 {offsets = [0, 96], sizes = [2, 32], strides = [1, 1]} : vector<2x128xf32> to vector<2x32xf32>
    %76 = math.tanh %75 : vector<2x32xf32>
    %77 = vector.extract_strided_slice %74 {offsets = [0, 32], sizes = [2, 32], strides = [1, 1]} : vector<2x96xf32> to vector<2x32xf32>
    %78 = arith.mulf %77, %61 : vector<2x32xf32>
    %79 = vector.extract_strided_slice %74 {offsets = [0, 0], sizes = [2, 32], strides = [1, 1]} : vector<2x96xf32> to vector<2x32xf32>
    %80 = arith.mulf %79, %76 : vector<2x32xf32>
    %81 = arith.addf %78, %80 : vector<2x32xf32>
    %82 = vector.extract_strided_slice %74 {offsets = [0, 64], sizes = [2, 32], strides = [1, 1]} : vector<2x96xf32> to vector<2x32xf32>
    %83 = math.tanh %81 : vector<2x32xf32>
    %84 = arith.mulf %82, %83 : vector<2x32xf32>
    %85 = vector.extract_strided_slice %32 {offsets = [2, 0, 0], sizes = [1, 2, 128], strides = [1, 1, 1]} : vector<8x2x128xf32> to vector<1x2x128xf32>
    %86 = vector.shape_cast %85 : vector<1x2x128xf32> to vector<2x128xf32>
    %cst_34 = arith.constant dense<0.000000e+00> : vector<2x128xf32>
    %87 = tpu.matmul %84, %40, %cst_34 {dimension_numbers = #tpu.dot_dimension_numbers<[1], [0], [0], [1], [0, 0, 1, 1], [], []>} : vector<2x32xf32>, vector<32x128xf32>, vector<2x128xf32> -> vector<2x128xf32>
    %88 = arith.addf %86, %87 : vector<2x128xf32>
    %89 = vector.extract_strided_slice %88 {offsets = [0, 0], sizes = [2, 96], strides = [1, 1]} : vector<2x128xf32> to vector<2x96xf32>
    %90 = arith.negf %89 : vector<2x96xf32>
    %91 = math.exp %90 : vector<2x96xf32>
    %cst_35 = arith.constant 1.000000e+00 : f32
    %92 = vector.broadcast %cst_35 : f32 to vector<2x96xf32>
    %93 = arith.addf %92, %91 : vector<2x96xf32>
    %94 = arith.divf %92, %93 : vector<2x96xf32>
    %95 = vector.extract_strided_slice %88 {offsets = [0, 96], sizes = [2, 32], strides = [1, 1]} : vector<2x128xf32> to vector<2x32xf32>
    %96 = math.tanh %95 : vector<2x32xf32>
    %97 = vector.extract_strided_slice %94 {offsets = [0, 32], sizes = [2, 32], strides = [1, 1]} : vector<2x96xf32> to vector<2x32xf32>
    %98 = arith.mulf %97, %81 : vector<2x32xf32>
    %99 = vector.extract_strided_slice %94 {offsets = [0, 0], sizes = [2, 32], strides = [1, 1]} : vector<2x96xf32> to vector<2x32xf32>
    %100 = arith.mulf %99, %96 : vector<2x32xf32>
    %101 = arith.addf %98, %100 : vector<2x32xf32>
    %102 = vector.extract_strided_slice %94 {offsets = [0, 64], sizes = [2, 32], strides = [1, 1]} : vector<2x96xf32> to vector<2x32xf32>
    %103 = math.tanh %101 : vector<2x32xf32>
    %104 = arith.mulf %102, %103 : vector<2x32xf32>
    %105 = vector.extract_strided_slice %32 {offsets = [3, 0, 0], sizes = [1, 2, 128], strides = [1, 1, 1]} : vector<8x2x128xf32> to vector<1x2x128xf32>
    %106 = vector.shape_cast %105 : vector<1x2x128xf32> to vector<2x128xf32>
    %cst_36 = arith.constant dense<0.000000e+00> : vector<2x128xf32>
    %107 = tpu.matmul %104, %40, %cst_36 {dimension_numbers = #tpu.dot_dimension_numbers<[1], [0], [0], [1], [0, 0, 1, 1], [], []>} : vector<2x32xf32>, vector<32x128xf32>, vector<2x128xf32> -> vector<2x128xf32>
    %108 = arith.addf %106, %107 : vector<2x128xf32>
    %109 = vector.extract_strided_slice %108 {offsets = [0, 0], sizes = [2, 96], strides = [1, 1]} : vector<2x128xf32> to vector<2x96xf32>
    %110 = arith.negf %109 : vector<2x96xf32>
    %111 = math.exp %110 : vector<2x96xf32>
    %cst_37 = arith.constant 1.000000e+00 : f32
    %112 = vector.broadcast %cst_37 : f32 to vector<2x96xf32>
    %113 = arith.addf %112, %111 : vector<2x96xf32>
    %114 = arith.divf %112, %113 : vector<2x96xf32>
    %115 = vector.extract_strided_slice %108 {offsets = [0, 96], sizes = [2, 32], strides = [1, 1]} : vector<2x128xf32> to vector<2x32xf32>
    %116 = math.tanh %115 : vector<2x32xf32>
    %117 = vector.extract_strided_slice %114 {offsets = [0, 32], sizes = [2, 32], strides = [1, 1]} : vector<2x96xf32> to vector<2x32xf32>
    %118 = arith.mulf %117, %101 : vector<2x32xf32>
    %119 = vector.extract_strided_slice %114 {offsets = [0, 0], sizes = [2, 32], strides = [1, 1]} : vector<2x96xf32> to vector<2x32xf32>
    %120 = arith.mulf %119, %116 : vector<2x32xf32>
    %121 = arith.addf %118, %120 : vector<2x32xf32>
    %122 = vector.extract_strided_slice %114 {offsets = [0, 64], sizes = [2, 32], strides = [1, 1]} : vector<2x96xf32> to vector<2x32xf32>
    %123 = math.tanh %121 : vector<2x32xf32>
    %124 = arith.mulf %122, %123 : vector<2x32xf32>
    %125 = vector.extract_strided_slice %32 {offsets = [4, 0, 0], sizes = [1, 2, 128], strides = [1, 1, 1]} : vector<8x2x128xf32> to vector<1x2x128xf32>
    %126 = vector.shape_cast %125 : vector<1x2x128xf32> to vector<2x128xf32>
    %cst_38 = arith.constant dense<0.000000e+00> : vector<2x128xf32>
    %127 = tpu.matmul %124, %40, %cst_38 {dimension_numbers = #tpu.dot_dimension_numbers<[1], [0], [0], [1], [0, 0, 1, 1], [], []>} : vector<2x32xf32>, vector<32x128xf32>, vector<2x128xf32> -> vector<2x128xf32>
    %128 = arith.addf %126, %127 : vector<2x128xf32>
    %129 = vector.extract_strided_slice %128 {offsets = [0, 0], sizes = [2, 96], strides = [1, 1]} : vector<2x128xf32> to vector<2x96xf32>
    %130 = arith.negf %129 : vector<2x96xf32>
    %131 = math.exp %130 : vector<2x96xf32>
    %cst_39 = arith.constant 1.000000e+00 : f32
    %132 = vector.broadcast %cst_39 : f32 to vector<2x96xf32>
    %133 = arith.addf %132, %131 : vector<2x96xf32>
    %134 = arith.divf %132, %133 : vector<2x96xf32>
    %135 = vector.extract_strided_slice %128 {offsets = [0, 96], sizes = [2, 32], strides = [1, 1]} : vector<2x128xf32> to vector<2x32xf32>
    %136 = math.tanh %135 : vector<2x32xf32>
    %137 = vector.extract_strided_slice %134 {offsets = [0, 32], sizes = [2, 32], strides = [1, 1]} : vector<2x96xf32> to vector<2x32xf32>
    %138 = arith.mulf %137, %121 : vector<2x32xf32>
    %139 = vector.extract_strided_slice %134 {offsets = [0, 0], sizes = [2, 32], strides = [1, 1]} : vector<2x96xf32> to vector<2x32xf32>
    %140 = arith.mulf %139, %136 : vector<2x32xf32>
    %141 = arith.addf %138, %140 : vector<2x32xf32>
    %142 = vector.extract_strided_slice %134 {offsets = [0, 64], sizes = [2, 32], strides = [1, 1]} : vector<2x96xf32> to vector<2x32xf32>
    %143 = math.tanh %141 : vector<2x32xf32>
    %144 = arith.mulf %142, %143 : vector<2x32xf32>
    %145 = vector.extract_strided_slice %32 {offsets = [5, 0, 0], sizes = [1, 2, 128], strides = [1, 1, 1]} : vector<8x2x128xf32> to vector<1x2x128xf32>
    %146 = vector.shape_cast %145 : vector<1x2x128xf32> to vector<2x128xf32>
    %cst_40 = arith.constant dense<0.000000e+00> : vector<2x128xf32>
    %147 = tpu.matmul %144, %40, %cst_40 {dimension_numbers = #tpu.dot_dimension_numbers<[1], [0], [0], [1], [0, 0, 1, 1], [], []>} : vector<2x32xf32>, vector<32x128xf32>, vector<2x128xf32> -> vector<2x128xf32>
    %148 = arith.addf %146, %147 : vector<2x128xf32>
    %149 = vector.extract_strided_slice %148 {offsets = [0, 0], sizes = [2, 96], strides = [1, 1]} : vector<2x128xf32> to vector<2x96xf32>
    %150 = arith.negf %149 : vector<2x96xf32>
    %151 = math.exp %150 : vector<2x96xf32>
    %cst_41 = arith.constant 1.000000e+00 : f32
    %152 = vector.broadcast %cst_41 : f32 to vector<2x96xf32>
    %153 = arith.addf %152, %151 : vector<2x96xf32>
    %154 = arith.divf %152, %153 : vector<2x96xf32>
    %155 = vector.extract_strided_slice %148 {offsets = [0, 96], sizes = [2, 32], strides = [1, 1]} : vector<2x128xf32> to vector<2x32xf32>
    %156 = math.tanh %155 : vector<2x32xf32>
    %157 = vector.extract_strided_slice %154 {offsets = [0, 32], sizes = [2, 32], strides = [1, 1]} : vector<2x96xf32> to vector<2x32xf32>
    %158 = arith.mulf %157, %141 : vector<2x32xf32>
    %159 = vector.extract_strided_slice %154 {offsets = [0, 0], sizes = [2, 32], strides = [1, 1]} : vector<2x96xf32> to vector<2x32xf32>
    %160 = arith.mulf %159, %156 : vector<2x32xf32>
    %161 = arith.addf %158, %160 : vector<2x32xf32>
    %162 = vector.extract_strided_slice %154 {offsets = [0, 64], sizes = [2, 32], strides = [1, 1]} : vector<2x96xf32> to vector<2x32xf32>
    %163 = math.tanh %161 : vector<2x32xf32>
    %164 = arith.mulf %162, %163 : vector<2x32xf32>
    %165 = vector.extract_strided_slice %32 {offsets = [6, 0, 0], sizes = [1, 2, 128], strides = [1, 1, 1]} : vector<8x2x128xf32> to vector<1x2x128xf32>
    %166 = vector.shape_cast %165 : vector<1x2x128xf32> to vector<2x128xf32>
    %cst_42 = arith.constant dense<0.000000e+00> : vector<2x128xf32>
    %167 = tpu.matmul %164, %40, %cst_42 {dimension_numbers = #tpu.dot_dimension_numbers<[1], [0], [0], [1], [0, 0, 1, 1], [], []>} : vector<2x32xf32>, vector<32x128xf32>, vector<2x128xf32> -> vector<2x128xf32>
    %168 = arith.addf %166, %167 : vector<2x128xf32>
    %169 = vector.extract_strided_slice %168 {offsets = [0, 0], sizes = [2, 96], strides = [1, 1]} : vector<2x128xf32> to vector<2x96xf32>
    %170 = arith.negf %169 : vector<2x96xf32>
    %171 = math.exp %170 : vector<2x96xf32>
    %cst_43 = arith.constant 1.000000e+00 : f32
    %172 = vector.broadcast %cst_43 : f32 to vector<2x96xf32>
    %173 = arith.addf %172, %171 : vector<2x96xf32>
    %174 = arith.divf %172, %173 : vector<2x96xf32>
    %175 = vector.extract_strided_slice %168 {offsets = [0, 96], sizes = [2, 32], strides = [1, 1]} : vector<2x128xf32> to vector<2x32xf32>
    %176 = math.tanh %175 : vector<2x32xf32>
    %177 = vector.extract_strided_slice %174 {offsets = [0, 32], sizes = [2, 32], strides = [1, 1]} : vector<2x96xf32> to vector<2x32xf32>
    %178 = arith.mulf %177, %161 : vector<2x32xf32>
    %179 = vector.extract_strided_slice %174 {offsets = [0, 0], sizes = [2, 32], strides = [1, 1]} : vector<2x96xf32> to vector<2x32xf32>
    %180 = arith.mulf %179, %176 : vector<2x32xf32>
    %181 = arith.addf %178, %180 : vector<2x32xf32>
    %182 = vector.extract_strided_slice %174 {offsets = [0, 64], sizes = [2, 32], strides = [1, 1]} : vector<2x96xf32> to vector<2x32xf32>
    %183 = math.tanh %181 : vector<2x32xf32>
    %184 = arith.mulf %182, %183 : vector<2x32xf32>
    %185 = vector.extract_strided_slice %32 {offsets = [7, 0, 0], sizes = [1, 2, 128], strides = [1, 1, 1]} : vector<8x2x128xf32> to vector<1x2x128xf32>
    %186 = vector.shape_cast %185 : vector<1x2x128xf32> to vector<2x128xf32>
    %cst_44 = arith.constant dense<0.000000e+00> : vector<2x128xf32>
    %187 = tpu.matmul %184, %40, %cst_44 {dimension_numbers = #tpu.dot_dimension_numbers<[1], [0], [0], [1], [0, 0, 1, 1], [], []>} : vector<2x32xf32>, vector<32x128xf32>, vector<2x128xf32> -> vector<2x128xf32>
    %188 = arith.addf %186, %187 : vector<2x128xf32>
    %189 = vector.extract_strided_slice %188 {offsets = [0, 0], sizes = [2, 96], strides = [1, 1]} : vector<2x128xf32> to vector<2x96xf32>
    %190 = arith.negf %189 : vector<2x96xf32>
    %191 = math.exp %190 : vector<2x96xf32>
    %cst_45 = arith.constant 1.000000e+00 : f32
    %192 = vector.broadcast %cst_45 : f32 to vector<2x96xf32>
    %193 = arith.addf %192, %191 : vector<2x96xf32>
    %194 = arith.divf %192, %193 : vector<2x96xf32>
    %195 = vector.extract_strided_slice %188 {offsets = [0, 96], sizes = [2, 32], strides = [1, 1]} : vector<2x128xf32> to vector<2x32xf32>
    %196 = math.tanh %195 : vector<2x32xf32>
    %197 = vector.extract_strided_slice %194 {offsets = [0, 32], sizes = [2, 32], strides = [1, 1]} : vector<2x96xf32> to vector<2x32xf32>
    %198 = arith.mulf %197, %181 : vector<2x32xf32>
    %199 = vector.extract_strided_slice %194 {offsets = [0, 0], sizes = [2, 32], strides = [1, 1]} : vector<2x96xf32> to vector<2x32xf32>
    %200 = arith.mulf %199, %196 : vector<2x32xf32>
    %201 = arith.addf %198, %200 : vector<2x32xf32>
    %202 = vector.extract_strided_slice %194 {offsets = [0, 64], sizes = [2, 32], strides = [1, 1]} : vector<2x96xf32> to vector<2x32xf32>
    %203 = math.tanh %201 : vector<2x32xf32>
    %204 = arith.mulf %202, %203 : vector<2x32xf32>
    %c48 = arith.constant 48 : index
    %c0_46 = arith.constant 0 : index
    %205 = vector.load %arg4[%c48, %c0_46] : memref<120x128xf32, #tpu.memory_space<vmem>>, vector<32x128xf32>
    %206 = vector.shape_cast %64 : vector<2x32xf32> to vector<2x1x32xf32>
    %207 = vector.shape_cast %84 : vector<2x32xf32> to vector<2x1x32xf32>
    %208 = vector.shape_cast %104 : vector<2x32xf32> to vector<2x1x32xf32>
    %209 = vector.shape_cast %124 : vector<2x32xf32> to vector<2x1x32xf32>
    %210 = vector.shape_cast %144 : vector<2x32xf32> to vector<2x1x32xf32>
    %211 = vector.shape_cast %164 : vector<2x32xf32> to vector<2x1x32xf32>
    %212 = vector.shape_cast %184 : vector<2x32xf32> to vector<2x1x32xf32>
    %213 = vector.shape_cast %204 : vector<2x32xf32> to vector<2x1x32xf32>
    %214 = tpu.concatenate %206, %207, %208, %209, %210, %211, %212, %213 in 1 : vector<2x1x32xf32>, vector<2x1x32xf32>, vector<2x1x32xf32>, vector<2x1x32xf32>, vector<2x1x32xf32>, vector<2x1x32xf32>, vector<2x1x32xf32>, vector<2x1x32xf32> -> vector<2x8x32xf32>
    %215 = vector.shape_cast %214 : vector<2x8x32xf32> to vector<16x32xf32>
    %cst_47 = arith.constant dense<0.000000e+00> : vector<16x128xf32>
    %216 = tpu.matmul %215, %205, %cst_47 {dimension_numbers = #tpu.dot_dimension_numbers<[1], [0], [0], [1], [0, 0, 1, 1], [], []>} : vector<16x32xf32>, vector<32x128xf32>, vector<16x128xf32> -> vector<16x128xf32>
    %217 = vector.shape_cast %216 : vector<16x128xf32> to vector<2x8x128xf32>
    %c0_48 = arith.constant 0 : index
    %c0_49 = arith.constant 0 : index
    %218 = vector.load %arg5[%c0_48, %c0_49] : memref<48x136xf32, #tpu.memory_space<vmem>>, vector<32x136xf32>
    %cst_50 = arith.constant dense<0.000000e+00> : vector<2x136xf32>
    %219 = tpu.matmul %204, %218, %cst_50 {dimension_numbers = #tpu.dot_dimension_numbers<[1], [0], [0], [1], [0, 0, 1, 1], [], []>} : vector<2x32xf32>, vector<32x136xf32>, vector<2x136xf32> -> vector<2x136xf32>
    %220 = vector.extract_strided_slice %39 {offsets = [0, 0, 0], sizes = [1, 2, 136], strides = [1, 1, 1]} : vector<4x2x136xf32> to vector<1x2x136xf32>
    %221 = vector.shape_cast %220 : vector<1x2x136xf32> to vector<2x136xf32>
    %222 = arith.addf %219, %221 : vector<2x136xf32>
    %223 = vector.extract_strided_slice %222 {offsets = [0, 128], sizes = [2, 8], strides = [1, 1]} : vector<2x136xf32> to vector<2x8xf32>
    %cst_51 = arith.constant dense<0xFF800000> : vector<2xf32>
    %224 = vector.multi_reduction <maximumf>, %223, %cst_51 [1] : vector<2x8xf32> to vector<2xf32>
    %225 = vector.shape_cast %224 : vector<2xf32> to vector<2x1xf32>
    %226 = vector.broadcast %225 : vector<2x1xf32> to vector<2x8xf32>
    %227 = arith.subf %223, %226 : vector<2x8xf32>
    %228 = math.exp %227 : vector<2x8xf32>
    %cst_52 = arith.constant dense<0.000000e+00> : vector<2xf32>
    %229 = vector.multi_reduction <add>, %228, %cst_52 [1] : vector<2x8xf32> to vector<2xf32>
    %230 = vector.shape_cast %229 : vector<2xf32> to vector<2x1xf32>
    %231 = tpu.reciprocal %230 {approx = true} : vector<2x1xf32> -> vector<2x1xf32>
    %232 = vector.broadcast %231 : vector<2x1xf32> to vector<2x8xf32>
    %233 = arith.mulf %228, %232 : vector<2x8xf32>
    %234 = vector.shape_cast %233 : vector<2x8xf32> to vector<2x8x1xf32>
    %235 = vector.broadcast %234 : vector<2x8x1xf32> to vector<2x8x128xf32>
    %236 = arith.mulf %235, %217 : vector<2x8x128xf32>
    %cst_53 = arith.constant dense<0.000000e+00> : vector<2x128xf32>
    %237 = vector.multi_reduction <add>, %236, %cst_53 [1] : vector<2x8x128xf32> to vector<2x128xf32>
    %238 = vector.extract_strided_slice %222 {offsets = [0, 0], sizes = [2, 128], strides = [1, 1]} : vector<2x136xf32> to vector<2x128xf32>
    %239 = arith.addf %238, %237 : vector<2x128xf32>
    %240 = vector.extract_strided_slice %239 {offsets = [0, 0], sizes = [2, 96], strides = [1, 1]} : vector<2x128xf32> to vector<2x96xf32>
    %241 = arith.negf %240 : vector<2x96xf32>
    %242 = math.exp %241 : vector<2x96xf32>
    %cst_54 = arith.constant 1.000000e+00 : f32
    %243 = vector.broadcast %cst_54 : f32 to vector<2x96xf32>
    %244 = arith.addf %243, %242 : vector<2x96xf32>
    %245 = arith.divf %243, %244 : vector<2x96xf32>
    %246 = vector.extract_strided_slice %239 {offsets = [0, 96], sizes = [2, 32], strides = [1, 1]} : vector<2x128xf32> to vector<2x32xf32>
    %247 = math.tanh %246 : vector<2x32xf32>
    %248 = vector.extract_strided_slice %245 {offsets = [0, 32], sizes = [2, 32], strides = [1, 1]} : vector<2x96xf32> to vector<2x32xf32>
    %249 = arith.mulf %248, %201 : vector<2x32xf32>
    %250 = vector.extract_strided_slice %245 {offsets = [0, 0], sizes = [2, 32], strides = [1, 1]} : vector<2x96xf32> to vector<2x32xf32>
    %251 = arith.mulf %250, %247 : vector<2x32xf32>
    %252 = arith.addf %249, %251 : vector<2x32xf32>
    %253 = vector.extract_strided_slice %245 {offsets = [0, 64], sizes = [2, 32], strides = [1, 1]} : vector<2x96xf32> to vector<2x32xf32>
    %254 = math.tanh %252 : vector<2x32xf32>
    %255 = arith.mulf %253, %254 : vector<2x32xf32>
    %c0_55 = arith.constant 0 : index
    %c0_56 = arith.constant 0 : index
    %c0_57 = arith.constant 0 : index
    %256 = vector.load %arg7[%c0_55, %c0_56, %c0_57] : memref<4x2x32xf32, #tpu.memory_space<vmem>>, vector<1x2x32xf32>
    %257 = vector.shape_cast %256 : vector<1x2x32xf32> to vector<2x32xf32>
    %258 = vector.shape_cast %255 : vector<2x32xf32> to vector<1x2x32xf32>
    tpu.vector_store %arg7[%c0_55, %c0_56, %c0_57], %258 {strides = array<i32>} : memref<4x2x32xf32, #tpu.memory_space<vmem>>, vector<1x2x32xf32>,
    %cst_58 = arith.constant dense<0.000000e+00> : vector<2x136xf32>
    %259 = tpu.matmul %255, %218, %cst_58 {dimension_numbers = #tpu.dot_dimension_numbers<[1], [0], [0], [1], [0, 0, 1, 1], [], []>} : vector<2x32xf32>, vector<32x136xf32>, vector<2x136xf32> -> vector<2x136xf32>
    %260 = vector.extract_strided_slice %39 {offsets = [1, 0, 0], sizes = [1, 2, 136], strides = [1, 1, 1]} : vector<4x2x136xf32> to vector<1x2x136xf32>
    %261 = vector.shape_cast %260 : vector<1x2x136xf32> to vector<2x136xf32>
    %262 = arith.addf %259, %261 : vector<2x136xf32>
    %263 = vector.extract_strided_slice %262 {offsets = [0, 128], sizes = [2, 8], strides = [1, 1]} : vector<2x136xf32> to vector<2x8xf32>
    %cst_59 = arith.constant dense<0xFF800000> : vector<2xf32>
    %264 = vector.multi_reduction <maximumf>, %263, %cst_59 [1] : vector<2x8xf32> to vector<2xf32>
    %265 = vector.shape_cast %264 : vector<2xf32> to vector<2x1xf32>
    %266 = vector.broadcast %265 : vector<2x1xf32> to vector<2x8xf32>
    %267 = arith.subf %263, %266 : vector<2x8xf32>
    %268 = math.exp %267 : vector<2x8xf32>
    %cst_60 = arith.constant dense<0.000000e+00> : vector<2xf32>
    %269 = vector.multi_reduction <add>, %268, %cst_60 [1] : vector<2x8xf32> to vector<2xf32>
    %270 = vector.shape_cast %269 : vector<2xf32> to vector<2x1xf32>
    %271 = tpu.reciprocal %270 {approx = true} : vector<2x1xf32> -> vector<2x1xf32>
    %272 = vector.broadcast %271 : vector<2x1xf32> to vector<2x8xf32>
    %273 = arith.mulf %268, %272 : vector<2x8xf32>
    %274 = vector.shape_cast %273 : vector<2x8xf32> to vector<2x8x1xf32>
    %275 = vector.broadcast %274 : vector<2x8x1xf32> to vector<2x8x128xf32>
    %276 = arith.mulf %275, %217 : vector<2x8x128xf32>
    %cst_61 = arith.constant dense<0.000000e+00> : vector<2x128xf32>
    %277 = vector.multi_reduction <add>, %276, %cst_61 [1] : vector<2x8x128xf32> to vector<2x128xf32>
    %278 = vector.extract_strided_slice %262 {offsets = [0, 0], sizes = [2, 128], strides = [1, 1]} : vector<2x136xf32> to vector<2x128xf32>
    %279 = arith.addf %278, %277 : vector<2x128xf32>
    %280 = vector.extract_strided_slice %279 {offsets = [0, 0], sizes = [2, 96], strides = [1, 1]} : vector<2x128xf32> to vector<2x96xf32>
    %281 = arith.negf %280 : vector<2x96xf32>
    %282 = math.exp %281 : vector<2x96xf32>
    %cst_62 = arith.constant 1.000000e+00 : f32
    %283 = vector.broadcast %cst_62 : f32 to vector<2x96xf32>
    %284 = arith.addf %283, %282 : vector<2x96xf32>
    %285 = arith.divf %283, %284 : vector<2x96xf32>
    %286 = vector.extract_strided_slice %279 {offsets = [0, 96], sizes = [2, 32], strides = [1, 1]} : vector<2x128xf32> to vector<2x32xf32>
    %287 = math.tanh %286 : vector<2x32xf32>
    %288 = vector.extract_strided_slice %285 {offsets = [0, 32], sizes = [2, 32], strides = [1, 1]} : vector<2x96xf32> to vector<2x32xf32>
    %289 = arith.mulf %288, %252 : vector<2x32xf32>
    %290 = vector.extract_strided_slice %285 {offsets = [0, 0], sizes = [2, 32], strides = [1, 1]} : vector<2x96xf32> to vector<2x32xf32>
    %291 = arith.mulf %290, %287 : vector<2x32xf32>
    %292 = arith.addf %289, %291 : vector<2x32xf32>
    %293 = vector.extract_strided_slice %285 {offsets = [0, 64], sizes = [2, 32], strides = [1, 1]} : vector<2x96xf32> to vector<2x32xf32>
    %294 = math.tanh %292 : vector<2x32xf32>
    %295 = arith.mulf %293, %294 : vector<2x32xf32>
    %c1_63 = arith.constant 1 : index
    %c0_64 = arith.constant 0 : index
    %c0_65 = arith.constant 0 : index
    %296 = vector.load %arg7[%c1_63, %c0_64, %c0_65] : memref<4x2x32xf32, #tpu.memory_space<vmem>>, vector<1x2x32xf32>
    %297 = vector.shape_cast %296 : vector<1x2x32xf32> to vector<2x32xf32>
    %298 = vector.shape_cast %295 : vector<2x32xf32> to vector<1x2x32xf32>
    tpu.vector_store %arg7[%c1_63, %c0_64, %c0_65], %298 {strides = array<i32>} : memref<4x2x32xf32, #tpu.memory_space<vmem>>, vector<1x2x32xf32>,
    %cst_66 = arith.constant dense<0.000000e+00> : vector<2x136xf32>
    %299 = tpu.matmul %295, %218, %cst_66 {dimension_numbers = #tpu.dot_dimension_numbers<[1], [0], [0], [1], [0, 0, 1, 1], [], []>} : vector<2x32xf32>, vector<32x136xf32>, vector<2x136xf32> -> vector<2x136xf32>
    %300 = vector.extract_strided_slice %39 {offsets = [2, 0, 0], sizes = [1, 2, 136], strides = [1, 1, 1]} : vector<4x2x136xf32> to vector<1x2x136xf32>
    %301 = vector.shape_cast %300 : vector<1x2x136xf32> to vector<2x136xf32>
    %302 = arith.addf %299, %301 : vector<2x136xf32>
    %303 = vector.extract_strided_slice %302 {offsets = [0, 128], sizes = [2, 8], strides = [1, 1]} : vector<2x136xf32> to vector<2x8xf32>
    %cst_67 = arith.constant dense<0xFF800000> : vector<2xf32>
    %304 = vector.multi_reduction <maximumf>, %303, %cst_67 [1] : vector<2x8xf32> to vector<2xf32>
    %305 = vector.shape_cast %304 : vector<2xf32> to vector<2x1xf32>
    %306 = vector.broadcast %305 : vector<2x1xf32> to vector<2x8xf32>
    %307 = arith.subf %303, %306 : vector<2x8xf32>
    %308 = math.exp %307 : vector<2x8xf32>
    %cst_68 = arith.constant dense<0.000000e+00> : vector<2xf32>
    %309 = vector.multi_reduction <add>, %308, %cst_68 [1] : vector<2x8xf32> to vector<2xf32>
    %310 = vector.shape_cast %309 : vector<2xf32> to vector<2x1xf32>
    %311 = tpu.reciprocal %310 {approx = true} : vector<2x1xf32> -> vector<2x1xf32>
    %312 = vector.broadcast %311 : vector<2x1xf32> to vector<2x8xf32>
    %313 = arith.mulf %308, %312 : vector<2x8xf32>
    %314 = vector.shape_cast %313 : vector<2x8xf32> to vector<2x8x1xf32>
    %315 = vector.broadcast %314 : vector<2x8x1xf32> to vector<2x8x128xf32>
    %316 = arith.mulf %315, %217 : vector<2x8x128xf32>
    %cst_69 = arith.constant dense<0.000000e+00> : vector<2x128xf32>
    %317 = vector.multi_reduction <add>, %316, %cst_69 [1] : vector<2x8x128xf32> to vector<2x128xf32>
    %318 = vector.extract_strided_slice %302 {offsets = [0, 0], sizes = [2, 128], strides = [1, 1]} : vector<2x136xf32> to vector<2x128xf32>
    %319 = arith.addf %318, %317 : vector<2x128xf32>
    %320 = vector.extract_strided_slice %319 {offsets = [0, 0], sizes = [2, 96], strides = [1, 1]} : vector<2x128xf32> to vector<2x96xf32>
    %321 = arith.negf %320 : vector<2x96xf32>
    %322 = math.exp %321 : vector<2x96xf32>
    %cst_70 = arith.constant 1.000000e+00 : f32
    %323 = vector.broadcast %cst_70 : f32 to vector<2x96xf32>
    %324 = arith.addf %323, %322 : vector<2x96xf32>
    %325 = arith.divf %323, %324 : vector<2x96xf32>
    %326 = vector.extract_strided_slice %319 {offsets = [0, 96], sizes = [2, 32], strides = [1, 1]} : vector<2x128xf32> to vector<2x32xf32>
    %327 = math.tanh %326 : vector<2x32xf32>
    %328 = vector.extract_strided_slice %325 {offsets = [0, 32], sizes = [2, 32], strides = [1, 1]} : vector<2x96xf32> to vector<2x32xf32>
    %329 = arith.mulf %328, %292 : vector<2x32xf32>
    %330 = vector.extract_strided_slice %325 {offsets = [0, 0], sizes = [2, 32], strides = [1, 1]} : vector<2x96xf32> to vector<2x32xf32>
    %331 = arith.mulf %330, %327 : vector<2x32xf32>
    %332 = arith.addf %329, %331 : vector<2x32xf32>
    %333 = vector.extract_strided_slice %325 {offsets = [0, 64], sizes = [2, 32], strides = [1, 1]} : vector<2x96xf32> to vector<2x32xf32>
    %334 = math.tanh %332 : vector<2x32xf32>
    %335 = arith.mulf %333, %334 : vector<2x32xf32>
    %c2 = arith.constant 2 : index
    %c0_71 = arith.constant 0 : index
    %c0_72 = arith.constant 0 : index
    %336 = vector.load %arg7[%c2, %c0_71, %c0_72] : memref<4x2x32xf32, #tpu.memory_space<vmem>>, vector<1x2x32xf32>
    %337 = vector.shape_cast %336 : vector<1x2x32xf32> to vector<2x32xf32>
    %338 = vector.shape_cast %335 : vector<2x32xf32> to vector<1x2x32xf32>
    tpu.vector_store %arg7[%c2, %c0_71, %c0_72], %338 {strides = array<i32>} : memref<4x2x32xf32, #tpu.memory_space<vmem>>, vector<1x2x32xf32>,
    %cst_73 = arith.constant dense<0.000000e+00> : vector<2x136xf32>
    %339 = tpu.matmul %335, %218, %cst_73 {dimension_numbers = #tpu.dot_dimension_numbers<[1], [0], [0], [1], [0, 0, 1, 1], [], []>} : vector<2x32xf32>, vector<32x136xf32>, vector<2x136xf32> -> vector<2x136xf32>
    %340 = vector.extract_strided_slice %39 {offsets = [3, 0, 0], sizes = [1, 2, 136], strides = [1, 1, 1]} : vector<4x2x136xf32> to vector<1x2x136xf32>
    %341 = vector.shape_cast %340 : vector<1x2x136xf32> to vector<2x136xf32>
    %342 = arith.addf %339, %341 : vector<2x136xf32>
    %343 = vector.extract_strided_slice %342 {offsets = [0, 128], sizes = [2, 8], strides = [1, 1]} : vector<2x136xf32> to vector<2x8xf32>
    %cst_74 = arith.constant dense<0xFF800000> : vector<2xf32>
    %344 = vector.multi_reduction <maximumf>, %343, %cst_74 [1] : vector<2x8xf32> to vector<2xf32>
    %345 = vector.shape_cast %344 : vector<2xf32> to vector<2x1xf32>
    %346 = vector.broadcast %345 : vector<2x1xf32> to vector<2x8xf32>
    %347 = arith.subf %343, %346 : vector<2x8xf32>
    %348 = math.exp %347 : vector<2x8xf32>
    %cst_75 = arith.constant dense<0.000000e+00> : vector<2xf32>
    %349 = vector.multi_reduction <add>, %348, %cst_75 [1] : vector<2x8xf32> to vector<2xf32>
    %350 = vector.shape_cast %349 : vector<2xf32> to vector<2x1xf32>
    %351 = tpu.reciprocal %350 {approx = true} : vector<2x1xf32> -> vector<2x1xf32>
    %352 = vector.broadcast %351 : vector<2x1xf32> to vector<2x8xf32>
    %353 = arith.mulf %348, %352 : vector<2x8xf32>
    %354 = vector.shape_cast %353 : vector<2x8xf32> to vector<2x8x1xf32>
    %355 = vector.broadcast %354 : vector<2x8x1xf32> to vector<2x8x128xf32>
    %356 = arith.mulf %355, %217 : vector<2x8x128xf32>
    %cst_76 = arith.constant dense<0.000000e+00> : vector<2x128xf32>
    %357 = vector.multi_reduction <add>, %356, %cst_76 [1] : vector<2x8x128xf32> to vector<2x128xf32>
    %358 = vector.extract_strided_slice %342 {offsets = [0, 0], sizes = [2, 128], strides = [1, 1]} : vector<2x136xf32> to vector<2x128xf32>
    %359 = arith.addf %358, %357 : vector<2x128xf32>
    %360 = vector.extract_strided_slice %359 {offsets = [0, 0], sizes = [2, 96], strides = [1, 1]} : vector<2x128xf32> to vector<2x96xf32>
    %361 = arith.negf %360 : vector<2x96xf32>
    %362 = math.exp %361 : vector<2x96xf32>
    %cst_77 = arith.constant 1.000000e+00 : f32
    %363 = vector.broadcast %cst_77 : f32 to vector<2x96xf32>
    %364 = arith.addf %363, %362 : vector<2x96xf32>
    %365 = arith.divf %363, %364 : vector<2x96xf32>
    %366 = vector.extract_strided_slice %359 {offsets = [0, 96], sizes = [2, 32], strides = [1, 1]} : vector<2x128xf32> to vector<2x32xf32>
    %367 = math.tanh %366 : vector<2x32xf32>
    %368 = vector.extract_strided_slice %365 {offsets = [0, 32], sizes = [2, 32], strides = [1, 1]} : vector<2x96xf32> to vector<2x32xf32>
    %369 = arith.mulf %368, %332 : vector<2x32xf32>
    %370 = vector.extract_strided_slice %365 {offsets = [0, 0], sizes = [2, 32], strides = [1, 1]} : vector<2x96xf32> to vector<2x32xf32>
    %371 = arith.mulf %370, %367 : vector<2x32xf32>
    %372 = arith.addf %369, %371 : vector<2x32xf32>
    %373 = vector.extract_strided_slice %365 {offsets = [0, 64], sizes = [2, 32], strides = [1, 1]} : vector<2x96xf32> to vector<2x32xf32>
    %374 = math.tanh %372 : vector<2x32xf32>
    %375 = arith.mulf %373, %374 : vector<2x32xf32>
    %c3 = arith.constant 3 : index
    %c0_78 = arith.constant 0 : index
    %c0_79 = arith.constant 0 : index
    %376 = vector.load %arg7[%c3, %c0_78, %c0_79] : memref<4x2x32xf32, #tpu.memory_space<vmem>>, vector<1x2x32xf32>
    %377 = vector.shape_cast %376 : vector<1x2x32xf32> to vector<2x32xf32>
    %378 = vector.shape_cast %375 : vector<2x32xf32> to vector<1x2x32xf32>
    tpu.vector_store %arg7[%c3, %c0_78, %c0_79], %378 {strides = array<i32>} : memref<4x2x32xf32, #tpu.memory_space<vmem>>, vector<1x2x32xf32>,
    %c80 = arith.constant 80 : index
    %c0_80 = arith.constant 0 : index
    %379 = vector.load %arg4[%c80, %c0_80] : memref<120x128xf32, #tpu.memory_space<vmem>>, vector<32x128xf32>
    %c112 = arith.constant 112 : index
    %c0_81 = arith.constant 0 : index
    %380 = vector.load %arg4[%c112, %c0_81] : memref<120x128xf32, #tpu.memory_space<vmem>>, vector<1x128xf32>
    %c0_82 = arith.constant 0 : index
    %c0_83 = arith.constant 0 : index
    %c0_84 = arith.constant 0 : index
    %381 = vector.load %arg7[%c0_82, %c0_83, %c0_84] : memref<4x2x32xf32, #tpu.memory_space<vmem>>, vector<4x2x32xf32>
    %382 = vector.shape_cast %381 : vector<4x2x32xf32> to vector<8x32xf32>
    %cst_85 = arith.constant dense<0.000000e+00> : vector<8x128xf32>
    %383 = tpu.matmul %382, %379, %cst_85 {dimension_numbers = #tpu.dot_dimension_numbers<[1], [0], [0], [1], [0, 0, 1, 1], [], []>} : vector<8x32xf32>, vector<32x128xf32>, vector<8x128xf32> -> vector<8x128xf32>
    %384 = vector.broadcast %380 : vector<1x128xf32> to vector<8x128xf32>
    %385 = arith.addf %383, %384 : vector<8x128xf32>
    %c0_86 = arith.constant 0 : index
    %c0_87 = arith.constant 0 : index
    %386 = vector.load %arg6[%c0_86, %c0_87] : memref<8x128xf32, #tpu.memory_space<vmem>>, vector<8x128xf32>
    tpu.vector_store %arg6[%c0_86, %c0_87], %385 {strides = array<i32>} : memref<8x128xf32, #tpu.memory_space<vmem>>, vector<8x128xf32>,
    return
  }
}

</mosaic_0001>

<llo_original>
// kernel: tpu_custom_call.1
$region0: #{tpu_custom_call.1}
  #allocation0 [shape = 'u32[]', space=smem, size = 0x4, offset = 0x4, fixed_abs, tag = 'smem constant byte address 0x4 - core index']
  #allocation1 [shape = 'u32[72,128]{1,0:T(1,128)}', space=vmem, size = 0x9000, scoped, tag = 'internal scratch']
  #allocation2 [shape = 'f32[4,2,32]{2,1,0:T(2,128)}', space=vmem, size = 0x1000, scoped, tag = 'scratch operand']
  %s0 = inlined_call_operand.vmem [shape: f32[8,2,8], index: 0, kind: input, shape index: {}]
  %s1 = inlined_call_operand.vmem [shape: f32[8,4], index: 1, kind: input, shape index: {}]
  %s2 = inlined_call_operand.vmem [shape: f32[2,2,32], index: 2, kind: input, shape index: {}]
  %s3 = inlined_call_operand.vmem [shape: f32[8,1,2], index: 3, kind: input, shape index: {}]
  %s4 = inlined_call_operand.hbm [shape: f32[120,128], index: 4, kind: input, shape index: {}]
  %s5 = inlined_call_operand.hbm [shape: f32[48,136], index: 5, kind: input, shape index: {}]
  %s6 = inlined_call_operand.hbm [shape: f32[8,128], index: 6, kind: output, shape index: {}]
  %s7 = sld [smem:[#allocation0]]
  $region42: #{tpu_custom_call.1} parent=0
    _
  %s9 = ssub.s32 1, %s7
  %s10 = scalar_select 0, %s9, %s7
  $region1: #{tpu_custom_call.1} parent=0
    #allocation3 [shape = 'u8[61440]{0}', space=vmem, size = 0xf000, scoped, tag = 'input window, operand 4, single buffered']
    #allocation4 [shape = 's32[1]{0}', space=sflag, size = 0x4, scoped, tag = 'scoped memory for tpu_custom_call.1']
    #allocation5 [shape = 's32[1]{0}', space=sflag, size = 0x4, scoped, tag = 'scoped memory for tpu_custom_call.1']
    #allocation6 [shape = 'u8[49152]{0}', space=vmem, size = 0xc000, scoped, tag = 'input window, operand 5, single buffered']
    #allocation7 [shape = 's32[1]{0}', space=sflag, size = 0x4, scoped, tag = 'scoped memory for tpu_custom_call.1']
    #allocation8 [shape = 'u8[4096]{0}', space=vmem, size = 0x1000, scoped, tag = 'output window, operand 0, single buffered']
    %11 = vsyncpa [#allocation4], 0
    %12 = vsyncpa [#allocation7], 0
    %13 = vsyncpa [#allocation5], 0
    // Predicated region
    $region2: #{tpu_custom_call.1} parent=1 // pred_check
      _
    $region3: #{tpu_custom_call.1} parent=1 // pred_check_branch
      %15 = sbr.rel (0) target = $region5
    $region4: #{tpu_custom_call.1} parent=1 // pred_region
      _
    $region5: #{tpu_custom_call.1} parent=1 // pred_fallthru
      _
    // Predicated region
    $region6: #{tpu_custom_call.1} parent=1 // pred_check
      _
    $region7: #{tpu_custom_call.1} parent=1 // pred_check_branch
      %17 = sbr.rel (0) target = $region9
    $region8: #{tpu_custom_call.1} parent=1 // pred_region
      _
    $region9: #{tpu_custom_call.1} parent=1 // pred_fallthru
      _
    // Predicated region
    $region10: #{tpu_custom_call.1} parent=1 // pred_check
      _
    $region11: #{tpu_custom_call.1} parent=1 // pred_check_branch
      %19 = sbr.rel (0) target = $region13
    $region12: #{tpu_custom_call.1} parent=1 // pred_region
      _
    $region13: #{tpu_custom_call.1} parent=1 // pred_fallthru
      _
    // Predicated region
    $region14: #{tpu_custom_call.1} parent=1 // pred_check
      _
    $region15: #{tpu_custom_call.1} parent=1 // pred_check_branch
      %21 = sbr.rel (0) target = $region17
    $region16: #{tpu_custom_call.1} parent=1 // pred_region
      _
    $region17: #{tpu_custom_call.1} parent=1 // pred_fallthru
      _
    // Predicated region
    $region18: #{tpu_custom_call.1} parent=1 // pred_check
      _
    $region19: #{tpu_custom_call.1} parent=1 // pred_check_branch
      %23 = sbr.rel (0) target = $region21
    $region20: #{tpu_custom_call.1} parent=1 // pred_region
      %25 = vsyncadd [#allocation4], 0
      %s26 = sshll.u32 %s4, 4
      %s27 = int_to_ptr.hbm [resolvable:$true] %s26
      %s28 = sshll.u32 [#allocation3], 4
      %s29 = int_to_ptr.vmem [resolvable:$true] %s28
      %34 = dma.hbm_to_vmem [thread:$0]  %s27, 1920, %s29, [#allocation4], 128, 128, 8
    $region21: #{tpu_custom_call.1} parent=1 // pred_fallthru
      _
    // Predicated region
    $region22: #{tpu_custom_call.1} parent=1 // pred_check
      _
    $region23: #{tpu_custom_call.1} parent=1 // pred_check_branch
      %36 = sbr.rel (0) target = $region25
    $region24: #{tpu_custom_call.1} parent=1 // pred_region
      %38 = vsyncadd [#allocation7], 0
      %s39 = sshll.u32 %s5, 4
      %s40 = int_to_ptr.hbm [resolvable:$true] %s39
      %s41 = sshll.u32 [#allocation6], 4
      %s42 = int_to_ptr.vmem [resolvable:$true] %s41
      %47 = dma.hbm_to_vmem [thread:$0]  %s40, 1536, %s42, [#allocation7], 256, 256, 16
    $region25: #{tpu_custom_call.1} parent=1 // pred_fallthru
      _
    // Predicated region
    $region26: #{tpu_custom_call.1} parent=1 // pred_check
      _
    $region27: #{tpu_custom_call.1} parent=1 // pred_check_branch
      %49 = sbr.rel (0) target = $region29
    $region28: #{tpu_custom_call.1} parent=1 // pred_region
      %51 = dma.done [#allocation4], 1920
    $region29: #{tpu_custom_call.1} parent=1 // pred_fallthru
      _
    // Predicated region
    $region30: #{tpu_custom_call.1} parent=1 // pred_check
      _
    $region31: #{tpu_custom_call.1} parent=1 // pred_check_branch
      %53 = sbr.rel (0) target = $region33
    $region32: #{tpu_custom_call.1} parent=1 // pred_region
      %55 = dma.done [#allocation7], 1536
    $region33: #{tpu_custom_call.1} parent=1 // pred_fallthru
      _
    %v56 = vld [vmem:[%s0] sm:$0x3]
    %v57 = vld [vmem:[%s0 + $0x2] sm:$0x3]
    %v58 = vld [vmem:[%s0 + $0x4] sm:$0x3]
    %v59 = vld [vmem:[%s0 + $0x6] sm:$0x3]
    %v60 = vld [vmem:[%s0 + $0x8] sm:$0x3]
    %v61 = vld [vmem:[%s0 + $0xa] sm:$0x3]
    %v62 = vld [vmem:[%s0 + $0xc] sm:$0x3]
    %v63 = vld [vmem:[%s0 + $0xe] sm:$0x3]
    %vm64 = vcmask 58368
    %v65 = vsel %vm64, %v56, 0.0
    %66 = vadd.xlane.f32.xlu0 %v65
    %v67 = vpop.xlane.xlu0 %66
    %v68 = vsel %vm64, %v57, 0.0
    %69 = vadd.xlane.f32.xlu0 %v68
    %v70 = vpop.xlane.xlu0 %69
    %v71 = vsel %vm64, %v58, 0.0
    %72 = vadd.xlane.f32.xlu0 %v71
    %v73 = vpop.xlane.xlu0 %72
    %v74 = vsel %vm64, %v59, 0.0
    %75 = vadd.xlane.f32.xlu0 %v74
    %v76 = vpop.xlane.xlu0 %75
    %v77 = vsel %vm64, %v60, 0.0
    %78 = vadd.xlane.f32.xlu0 %v77
    %v79 = vpop.xlane.xlu0 %78
    %v80 = vsel %vm64, %v61, 0.0
    %81 = vadd.xlane.f32.xlu0 %v80
    %v82 = vpop.xlane.xlu0 %81
    %v83 = vsel %vm64, %v62, 0.0
    %84 = vadd.xlane.f32.xlu0 %v83
    %v85 = vpop.xlane.xlu0 %84
    %v86 = vsel %vm64, %v63, 0.0
    %87 = vadd.xlane.f32.xlu0 %v86
    %v88 = vpop.xlane.xlu0 %87
    %vm89 = vcmask 1041408
    %v90 = vsel %vm89, %v67, 0.0
    %v91 = vrot.slane %v90, 4
    %v92 = vadd.f32 %v90, %v91
    %v93 = vrot.slane %v92, 2
    %v94 = vadd.f32 %v92, %v93
    %v95 = vrot.slane %v94, 1
    %v96 = vadd.f32 %v94, %v95
    %v97 = vsel %vm89, %v70, 0.0
    %v98 = vrot.slane %v97, 4
    %v99 = vadd.f32 %v97, %v98
    %v100 = vrot.slane %v99, 2
    %v101 = vadd.f32 %v99, %v100
    %v102 = vrot.slane %v101, 1
    %v103 = vadd.f32 %v101, %v102
    %v104 = vsel %vm89, %v73, 0.0
    %v105 = vrot.slane %v104, 4
    %v106 = vadd.f32 %v104, %v105
    %v107 = vrot.slane %v106, 2
    %v108 = vadd.f32 %v106, %v107
    %v109 = vrot.slane %v108, 1
    %v110 = vadd.f32 %v108, %v109
    %v111 = vsel %vm89, %v76, 0.0
    %v112 = vrot.slane %v111, 4
    %v113 = vadd.f32 %v111, %v112
    %v114 = vrot.slane %v113, 2
    %v115 = vadd.f32 %v113, %v114
    %v116 = vrot.slane %v115, 1
    %v117 = vadd.f32 %v115, %v116
    %v118 = vsel %vm89, %v79, 0.0
    %v119 = vrot.slane %v118, 4
    %v120 = vadd.f32 %v118, %v119
    %v121 = vrot.slane %v120, 2
    %v122 = vadd.f32 %v120, %v121
    %v123 = vrot.slane %v122, 1
    %v124 = vadd.f32 %v122, %v123
    %v125 = vsel %vm89, %v82, 0.0
    %v126 = vrot.slane %v125, 4
    %v127 = vadd.f32 %v125, %v126
    %v128 = vrot.slane %v127, 2
    %v129 = vadd.f32 %v127, %v128
    %v130 = vrot.slane %v129, 1
    %v131 = vadd.f32 %v129, %v130
    %v132 = vsel %vm89, %v85, 0.0
    %v133 = vrot.slane %v132, 4
    %v134 = vadd.f32 %v132, %v133
    %v135 = vrot.slane %v134, 2
    %v136 = vadd.f32 %v134, %v135
    %v137 = vrot.slane %v136, 1
    %v138 = vadd.f32 %v136, %v137
    %v139 = vsel %vm89, %v88, 0.0
    %v140 = vrot.slane %v139, 4
    %v141 = vadd.f32 %v139, %v140
    %v142 = vrot.slane %v141, 2
    %v143 = vadd.f32 %v141, %v142
    %v144 = vrot.slane %v143, 1
    %v145 = vadd.f32 %v143, %v144
    %v146 = vmul.f32 %v96, 0.0625
    %v147 = vmul.f32 %v103, 0.0625
    %v148 = vmul.f32 %v110, 0.0625
    %v149 = vmul.f32 %v117, 0.0625
    %v150 = vmul.f32 %v124, 0.0625
    %v151 = vmul.f32 %v131, 0.0625
    %v152 = vmul.f32 %v138, 0.0625
    %v153 = vmul.f32 %v145, 0.0625
    %v154 = vsub.f32 %v56, %v146
    %v155 = vsub.f32 %v57, %v147
    %v156 = vsub.f32 %v58, %v148
    %v157 = vsub.f32 %v59, %v149
    %v158 = vsub.f32 %v60, %v150
    %v159 = vsub.f32 %v61, %v151
    %v160 = vsub.f32 %v62, %v152
    %v161 = vsub.f32 %v63, %v153
    %v162 = vmul.f32 %v154, %v154
    %v163 = vmul.f32 %v155, %v155
    %v164 = vmul.f32 %v156, %v156
    %v165 = vmul.f32 %v157, %v157
    %v166 = vmul.f32 %v158, %v158
    %v167 = vmul.f32 %v159, %v159
    %v168 = vmul.f32 %v160, %v160
    %v169 = vmul.f32 %v161, %v161
    %v170 = vsel %vm64, %v162, 0.0
    %171 = vadd.xlane.f32.xlu0 %v170
    %v172 = vpop.xlane.xlu0 %171
    %v173 = vsel %vm64, %v163, 0.0
    %174 = vadd.xlane.f32.xlu0 %v173
    %v175 = vpop.xlane.xlu0 %174
    %v176 = vsel %vm64, %v164, 0.0
    %177 = vadd.xlane.f32.xlu0 %v176
    %v178 = vpop.xlane.xlu0 %177
    %v179 = vsel %vm64, %v165, 0.0
    %180 = vadd.xlane.f32.xlu0 %v179
    %v181 = vpop.xlane.xlu0 %180
    %v182 = vsel %vm64, %v166, 0.0
    %183 = vadd.xlane.f32.xlu0 %v182
    %v184 = vpop.xlane.xlu0 %183
    %v185 = vsel %vm64, %v167, 0.0
    %186 = vadd.xlane.f32.xlu0 %v185
    %v187 = vpop.xlane.xlu0 %186
    %v188 = vsel %vm64, %v168, 0.0
    %189 = vadd.xlane.f32.xlu0 %v188
    %v190 = vpop.xlane.xlu0 %189
    %v191 = vsel %vm64, %v169, 0.0
    %192 = vadd.xlane.f32.xlu0 %v191
    %v193 = vpop.xlane.xlu0 %192
    %v194 = vsel %vm89, %v172, 0.0
    %v195 = vrot.slane %v194, 4
    %v196 = vadd.f32 %v194, %v195
    %v197 = vrot.slane %v196, 2
    %v198 = vadd.f32 %v196, %v197
    %v199 = vrot.slane %v198, 1
    %v200 = vadd.f32 %v198, %v199
    %v201 = vsel %vm89, %v175, 0.0
    %v202 = vrot.slane %v201, 4
    %v203 = vadd.f32 %v201, %v202
    %v204 = vrot.slane %v203, 2
    %v205 = vadd.f32 %v203, %v204
    %v206 = vrot.slane %v205, 1
    %v207 = vadd.f32 %v205, %v206
    %v208 = vsel %vm89, %v178, 0.0
    %v209 = vrot.slane %v208, 4
    %v210 = vadd.f32 %v208, %v209
    %v211 = vrot.slane %v210, 2
    %v212 = vadd.f32 %v210, %v211
    %v213 = vrot.slane %v212, 1
    %v214 = vadd.f32 %v212, %v213
    %v215 = vsel %vm89, %v181, 0.0
    %v216 = vrot.slane %v215, 4
    %v217 = vadd.f32 %v215, %v216
    %v218 = vrot.slane %v217, 2
    %v219 = vadd.f32 %v217, %v218
    %v220 = vrot.slane %v219, 1
    %v221 = vadd.f32 %v219, %v220
    %v222 = vsel %vm89, %v184, 0.0
    %v223 = vrot.slane %v222, 4
    %v224 = vadd.f32 %v222, %v223
    %v225 = vrot.slane %v224, 2
    %v226 = vadd.f32 %v224, %v225
    %v227 = vrot.slane %v226, 1
    %v228 = vadd.f32 %v226, %v227
    %v229 = vsel %vm89, %v187, 0.0
    %v230 = vrot.slane %v229, 4
    %v231 = vadd.f32 %v229, %v230
    %v232 = vrot.slane %v231, 2
    %v233 = vadd.f32 %v231, %v232
    %v234 = vrot.slane %v233, 1
    %v235 = vadd.f32 %v233, %v234
    %v236 = vsel %vm89, %v190, 0.0
    %v237 = vrot.slane %v236, 4
    %v238 = vadd.f32 %v236, %v237
    %v239 = vrot.slane %v238, 2
    %v240 = vadd.f32 %v238, %v239
    %v241 = vrot.slane %v240, 1
    %v242 = vadd.f32 %v240, %v241
    %v243 = vsel %vm89, %v193, 0.0
    %v244 = vrot.slane %v243, 4
    %v245 = vadd.f32 %v243, %v244
    %v246 = vrot.slane %v245, 2
    %v247 = vadd.f32 %v245, %v246
    %v248 = vrot.slane %v247, 1
    %v249 = vadd.f32 %v247, %v248
    %v250 = vmul.f32 %v200, 0.0625
    %v251 = vmul.f32 %v207, 0.0625
    %v252 = vmul.f32 %v214, 0.0625
    %v253 = vmul.f32 %v221, 0.0625
    %v254 = vmul.f32 %v228, 0.0625
    %v255 = vmul.f32 %v235, 0.0625
    %v256 = vmul.f32 %v242, 0.0625
    %v257 = vmul.f32 %v249, 0.0625
    %v258 = vld [vmem:[%s3] sm:$0x1]
    %v259 = vld [vmem:[%s3 + $0x1] sm:$0x1]
    %v260 = vld [vmem:[%s3 + $0x2] sm:$0x1]
    %v261 = vld [vmem:[%s3 + $0x3] sm:$0x1]
    %v262 = vld [vmem:[%s3 + $0x4] sm:$0x1]
    %v263 = vld [vmem:[%s3 + $0x5] sm:$0x1]
    %v264 = vld [vmem:[%s3 + $0x6] sm:$0x1]
    %v265 = vld [vmem:[%s3 + $0x7] sm:$0x1]
    %v266 = vadd.f32 %v250, 1e-05
    %v267 = vadd.f32 %v251, 1e-05
    %v268 = vadd.f32 %v252, 1e-05
    %v269 = vadd.f32 %v253, 1e-05
    %v270 = vadd.f32 %v254, 1e-05
    %v271 = vadd.f32 %v255, 1e-05
    %v272 = vadd.f32 %v256, 1e-05
    %v273 = vadd.f32 %v257, 1e-05
    %v274 = vrsqrt.pop %v266
    %v275 = vmul.f32 %v274, %v266
    %v276 = vmul.f32 %v275, %v274
    %v277 = vmul.f32 0.5, %v276
    %v278 = vsub.f32 1.5, %v277
    %v279 = vmul.f32 %v274, %v278
    %vm280 = vweird.f32 %v266
    %vm281 = vweird.f32 %v274
    %vm282 = vmor %vm280, %vm281
    %v283 = vsel %vm282, %v274, %v279
    %v284 = vrsqrt.pop %v267
    %v285 = vmul.f32 %v284, %v267
    %v286 = vmul.f32 %v285, %v284
    %v287 = vmul.f32 0.5, %v286
    %v288 = vsub.f32 1.5, %v287
    %v289 = vmul.f32 %v284, %v288
    %vm290 = vweird.f32 %v267
    %vm291 = vweird.f32 %v284
    %vm292 = vmor %vm290, %vm291
    %v293 = vsel %vm292, %v284, %v289
    %v294 = vrsqrt.pop %v268
    %v295 = vmul.f32 %v294, %v268
    %v296 = vmul.f32 %v295, %v294
    %v297 = vmul.f32 0.5, %v296
    %v298 = vsub.f32 1.5, %v297
    %v299 = vmul.f32 %v294, %v298
    %vm300 = vweird.f32 %v268
    %vm301 = vweird.f32 %v294
    %vm302 = vmor %vm300, %vm301
    %v303 = vsel %vm302, %v294, %v299
    %v304 = vrsqrt.pop %v269
    %v305 = vmul.f32 %v304, %v269
    %v306 = vmul.f32 %v305, %v304
    %v307 = vmul.f32 0.5, %v306
    %v308 = vsub.f32 1.5, %v307
    %v309 = vmul.f32 %v304, %v308
    %vm310 = vweird.f32 %v269
    %vm311 = vweird.f32 %v304
    %vm312 = vmor %vm310, %vm311
    %v313 = vsel %vm312, %v304, %v309
    %v314 = vrsqrt.pop %v270
    %v315 = vmul.f32 %v314, %v270
    %v316 = vmul.f32 %v315, %v314
    %v317 = vmul.f32 0.5, %v316
    %v318 = vsub.f32 1.5, %v317
    %v319 = vmul.f32 %v314, %v318
    %vm320 = vweird.f32 %v270
    %vm321 = vweird.f32 %v314
    %vm322 = vmor %vm320, %vm321
    %v323 = vsel %vm322, %v314, %v319
    %v324 = vrsqrt.pop %v271
    %v325 = vmul.f32 %v324, %v271
    %v326 = vmul.f32 %v325, %v324
    %v327 = vmul.f32 0.5, %v326
    %v328 = vsub.f32 1.5, %v327
    %v329 = vmul.f32 %v324, %v328
    %vm330 = vweird.f32 %v271
    %vm331 = vweird.f32 %v324
    %vm332 = vmor %vm330, %vm331
    %v333 = vsel %vm332, %v324, %v329
    %v334 = vrsqrt.pop %v272
    %v335 = vmul.f32 %v334, %v272
    %v336 = vmul.f32 %v335, %v334
    %v337 = vmul.f32 0.5, %v336
    %v338 = vsub.f32 1.5, %v337
    %v339 = vmul.f32 %v334, %v338
    %vm340 = vweird.f32 %v272
    %vm341 = vweird.f32 %v334
    %vm342 = vmor %vm340, %vm341
    %v343 = vsel %vm342, %v334, %v339
    %v344 = vrsqrt.pop %v273
    %v345 = vmul.f32 %v344, %v273
    %v346 = vmul.f32 %v345, %v344
    %v347 = vmul.f32 0.5, %v346
    %v348 = vsub.f32 1.5, %v347
    %v349 = vmul.f32 %v344, %v348
    %vm350 = vweird.f32 %v273
    %vm351 = vweird.f32 %v344
    %vm352 = vmor %vm350, %vm351
    %v353 = vsel %vm352, %v344, %v349
    %v354 = vmul.f32 %v258, %v283
    %v355 = vmul.f32 %v259, %v293
    %v356 = vmul.f32 %v260, %v303
    %v357 = vmul.f32 %v261, %v313
    %v358 = vmul.f32 %v262, %v323
    %v359 = vmul.f32 %v263, %v333
    %v360 = vmul.f32 %v264, %v343
    %v361 = vmul.f32 %v265, %v353
    %v370 = vperm.slane %v354, 0
    %v371 = vperm.slane %v355, 0
    %v372 = vperm.slane %v356, 0
    %v373 = vperm.slane %v357, 0
    %v374 = vperm.slane %v358, 0
    %v375 = vperm.slane %v359, 0
    %v376 = vperm.slane %v360, 0
    %v377 = vperm.slane %v361, 0
    %378 = vset.pattern.permute.xlu0 0
    %379 = vperm.xlu0 %378, %v370
    %v380 = vpop.permute.xlu0 %379
    %382 = vset.pattern.permute.xlu0 0
    %383 = vperm.xlu0 %382, %v371
    %v384 = vpop.permute.xlu0 %383
    %386 = vset.pattern.permute.xlu0 0
    %387 = vperm.xlu0 %386, %v372
    %v388 = vpop.permute.xlu0 %387
    %390 = vset.pattern.permute.xlu0 0
    %391 = vperm.xlu0 %390, %v373
    %v392 = vpop.permute.xlu0 %391
    %394 = vset.pattern.permute.xlu0 0
    %395 = vperm.xlu0 %394, %v374
    %v396 = vpop.permute.xlu0 %395
    %398 = vset.pattern.permute.xlu0 0
    %399 = vperm.xlu0 %398, %v375
    %v400 = vpop.permute.xlu0 %399
    %402 = vset.pattern.permute.xlu0 0
    %403 = vperm.xlu0 %402, %v376
    %v404 = vpop.permute.xlu0 %403
    %406 = vset.pattern.permute.xlu0 0
    %407 = vperm.xlu0 %406, %v377
    %v408 = vpop.permute.xlu0 %407
    %v410 = vmul.f32 %v380, %v154
    %v411 = vmul.f32 %v384, %v155
    %v412 = vmul.f32 %v388, %v156
    %v413 = vmul.f32 %v392, %v157
    %v414 = vmul.f32 %v396, %v158
    %v415 = vmul.f32 %v400, %v159
    %v416 = vmul.f32 %v404, %v160
    %v417 = vmul.f32 %v408, %v161
    %v426 = vperm.slane %v258, 0
    %v427 = vperm.slane %v259, 0
    %v428 = vperm.slane %v260, 0
    %v429 = vperm.slane %v261, 0
    %v430 = vperm.slane %v262, 0
    %v431 = vperm.slane %v263, 0
    %v432 = vperm.slane %v264, 0
    %v433 = vperm.slane %v265, 0
    %434 = vset.pattern.permute.xlu0 1
    %435 = vperm.xlu0 %434, %v426
    %v436 = vpop.permute.xlu0 %435
    %438 = vset.pattern.permute.xlu0 1
    %439 = vperm.xlu0 %438, %v427
    %v440 = vpop.permute.xlu0 %439
    %442 = vset.pattern.permute.xlu0 1
    %443 = vperm.xlu0 %442, %v428
    %v444 = vpop.permute.xlu0 %443
    %446 = vset.pattern.permute.xlu0 1
    %447 = vperm.xlu0 %446, %v429
    %v448 = vpop.permute.xlu0 %447
    %450 = vset.pattern.permute.xlu0 1
    %451 = vperm.xlu0 %450, %v430
    %v452 = vpop.permute.xlu0 %451
    %454 = vset.pattern.permute.xlu0 1
    %455 = vperm.xlu0 %454, %v431
    %v456 = vpop.permute.xlu0 %455
    %458 = vset.pattern.permute.xlu0 1
    %459 = vperm.xlu0 %458, %v432
    %v460 = vpop.permute.xlu0 %459
    %462 = vset.pattern.permute.xlu0 1
    %463 = vperm.xlu0 %462, %v433
    %v464 = vpop.permute.xlu0 %463
    %v466 = vadd.f32 %v410, %v436
    %v467 = vadd.f32 %v411, %v440
    %v468 = vadd.f32 %v412, %v444
    %v469 = vadd.f32 %v413, %v448
    %v470 = vadd.f32 %v414, %v452
    %v471 = vadd.f32 %v415, %v456
    %v472 = vadd.f32 %v416, %v460
    %v473 = vadd.f32 %v417, %v464
    %v474 = vld [vmem:[#allocation3] sm:$0xff]
    %v475 = vld [vmem:[#allocation3 + $0x28] sm:$0x1]
    %v476 = vperm.slane %v475, 0
    %485 = vst [vmem:[#allocation1] ss:$4 sm:$0xff] %v466
    %s486 = scalar_lea.vmem [#allocation1], 1
    %487 = vst [vmem:[%s486] ss:$4 sm:$0xff] %v467
    %s488 = scalar_lea.vmem [#allocation1], 2
    %489 = vst [vmem:[%s488] ss:$4 sm:$0xff] %v468
    %s490 = scalar_lea.vmem [#allocation1], 3
    %491 = vst [vmem:[%s490] ss:$4 sm:$0xff] %v469
    %s492 = scalar_lea.vmem [#allocation1], 32
    %493 = vst [vmem:[%s492] ss:$4 sm:$0xff] %v470
    %s494 = scalar_lea.vmem [#allocation1], 33
    %495 = vst [vmem:[%s494] ss:$4 sm:$0xff] %v471
    %s496 = scalar_lea.vmem [#allocation1], 34
    %497 = vst [vmem:[%s496] ss:$4 sm:$0xff] %v472
    %s498 = scalar_lea.vmem [#allocation1], 35
    %499 = vst [vmem:[%s498] ss:$4 sm:$0xff] %v473
    %v500 = vld.sshfl [vmem:[#allocation1] sm:$0xff pattern:$0x73625140]
    %v501 = vld.sshfl [vmem:[#allocation1 + $0x20] sm:$0xff pattern:$0x73625140]
    %vm502 = vcmask 64512
    %v503 = vsel %vm502, %v500, 0
    %v505 = vsel %vm502, %v501, 0
    %507 = vmatpush.msra.mxu0 0.0
    %508 = vmatpush.msra.mxu0 0.0
    %509 = vmatpush.msra.mxu0 0.0
    %510 = vmatpush.msra.mxu0 0.0
    %511 = vmatpush.msra.mxu0 0.0
    %512 = vmatpush.msra.mxu0 0.0
    %513 = vmatpush.msra.mxu0 0.0
    %514 = vmatpush.msra.mxu0 0.0
    %515 = vmatpush.msra.mxu0 0.0
    %516 = vmatpush.msra.mxu0 0.0
    %517 = vmatpush.msra.mxu0 0.0
    %518 = vmatpush.msra.mxu0 0.0
    %519 = vmatpush.msra.mxu0 0.0
    %520 = vmatpush.msra.mxu0 0.0
    %521 = vmatpush.msra.mxu0 0.0
    %522 = vmatpush.msra.mxu0 %v474
    %523 = vmatmul.f32.gmra.mxu0 %v503
    %v524 = vpop.f32.mrf.mxu0
    %v525 = vadd.f32 %v476, %v524
    %526 = vmatmul.f32.gmra.mxu0 %v505
    %v527 = vpop.f32.mrf.mxu0
    %v528 = vadd.f32 %v476, %v527
    %529 = vdwg.mxu0
    %v532 = vrot.slane %v525, 2
    %v533 = vrot.slane %v525, 4
    %v534 = vrot.slane %v525, 6
    %v535 = vrot.slane %v528, 2
    %v536 = vrot.slane %v528, 4
    %v537 = vrot.slane %v528, 6
    %v544 = vld [vmem:[#allocation6 + $0x40] sm:$0xf]
    %v545 = vld [vmem:[#allocation6 + $0x48] sm:$0xf]
    %s546 = scalar_lea.vmem [#allocation6], 80
    %v547 = vld [vmem:[%s546] ss:$8 sm:$0x3]
    %v548 = vld [vmem:[%s1] sm:$0xff]
    %v550 = vperm.slane %v547, 0
    %v551 = vperm.slane %v547, 1
    %vm554 = vcmask 31744
    %v556 = vsel %vm554, %v548, 0
    %vm558 = vcmask 1043456
    %v560 = vsel %vm558, %v544, 0
    %v563 = vsel %vm558, %v545, 0
    %565 = vmatpush.msra.mxu0 0.0
    %566 = vmatpush.msra.mxu0 0.0
    %567 = vmatpush.msra.mxu0 0.0
    %568 = vmatpush.msra.mxu0 0.0
    %569 = vmatpush.msra.mxu0 0.0
    %570 = vmatpush.msra.mxu0 0.0
    %571 = vmatpush.msra.mxu0 0.0
    %572 = vmatpush.msra.mxu0 0.0
    %573 = vmatpush.msra.mxu0 0.0
    %574 = vmatpush.msra.mxu0 0.0
    %575 = vmatpush.msra.mxu0 0.0
    %576 = vmatpush.msra.mxu0 0.0
    %577 = vmatpush.msra.mxu0 0.0
    %578 = vmatpush.msra.mxu0 0.0
    %579 = vmatpush.msra.mxu0 0.0
    %580 = vmatpush.msra.mxu0 %v560
    %581 = vmatmul.f32.gmra.mxu0 %v556
    %v582 = vpop.f32.mrf.mxu0
    %v583 = vadd.f32 %v550, %v582
    %584 = vdwg.mxu0
    %585 = vmatpush.msra.mxu0 0.0
    %586 = vmatpush.msra.mxu0 0.0
    %587 = vmatpush.msra.mxu0 0.0
    %588 = vmatpush.msra.mxu0 0.0
    %589 = vmatpush.msra.mxu0 0.0
    %590 = vmatpush.msra.mxu0 0.0
    %591 = vmatpush.msra.mxu0 0.0
    %592 = vmatpush.msra.mxu0 0.0
    %593 = vmatpush.msra.mxu0 0.0
    %594 = vmatpush.msra.mxu0 0.0
    %595 = vmatpush.msra.mxu0 0.0
    %596 = vmatpush.msra.mxu0 0.0
    %597 = vmatpush.msra.mxu0 0.0
    %598 = vmatpush.msra.mxu0 0.0
    %599 = vmatpush.msra.mxu0 0.0
    %600 = vmatpush.msra.mxu0 %v563
    %601 = vmatmul.f32.gmra.mxu0 %v556
    %v602 = vpop.f32.mrf.mxu0
    %v603 = vadd.f32 %v551, %v602
    %604 = vdwg.mxu0
    %v607 = vrot.slane %v603, 6
    %v608 = vsel %vm89, %v583, %v607
    %vm609 = vcmask 1043458
    %v610 = vsel %vm609, %v583, %v607
    %v611 = vrot.slane %v610, 2
    %vm612 = vcmask 1045508
    %v613 = vsel %vm612, %v583, %v607
    %v614 = vrot.slane %v613, 4
    %vm615 = vcmask 1045504
    %v616 = vsel %vm615, %v607, %v583
    %v617 = vrot.slane %v616, 6
    %v618 = vld [vmem:[#allocation3 + $0x8] sm:$0xff]
    %v619 = vld [vmem:[#allocation3 + $0x10] sm:$0xff]
    %v620 = vld [vmem:[#allocation3 + $0x18] sm:$0xff]
    %v621 = vld [vmem:[#allocation3 + $0x20] sm:$0xff]
    %v622 = vld [vmem:[%s2] sm:$0x3]
    %s623 = scalar_lea.vmem %s2, 2
    %v624 = vld [vmem:[%s623] sm:$0x3]
    %vm625 = vcmask 261120
    %v627 = vsel %vm625, %v622, 0
    %629 = vmatpush.msra.mxu0 0.0
    %630 = vmatpush.msra.mxu0 0.0
    %631 = vmatpush.msra.mxu0 0.0
    %632 = vmatpush.msra.mxu0 0.0
    %633 = vmatpush.msra.mxu0 0.0
    %634 = vmatpush.msra.mxu0 0.0
    %635 = vmatpush.msra.mxu0 0.0
    %636 = vmatpush.msra.mxu0 0.0
    %637 = vmatpush.msra.mxu0 0.0
    %638 = vmatpush.msra.mxu0 0.0
    %639 = vmatpush.msra.mxu0 0.0
    %640 = vmatpush.msra.mxu0 0.0
    %641 = vmatpush.msra.mxu0 %v621
    %642 = vmatpush.msra.mxu0 %v620
    %643 = vmatpush.msra.mxu0 %v619
    %644 = vmatpush.msra.mxu0 %v618
    %645 = vmatmul.f32.gmra.mxu0 %v627
    %v646 = vpop.f32.mrf.mxu0
    %v647 = vadd.f32 0.0, %v646
    %648 = vdwg.mxu0
    %v649 = vadd.f32 %v525, %v647
    %v650 = vxor.u32 %v649, 2147483648
    %v651 = vmul.f32 %v650, 1.442695
    %v652 = vpow.pop %v651
    %v653 = vadd.f32 %v652, 1.0
    %v654 = vrcp.pop %v653
    %v655 = vmul.f32 %v653, %v654
    %v656 = vsub.f32 1.0, %v655
    %v657 = vmul.f32 %v654, %v656
    %v658 = vadd.f32 %v654, %v657
    %vm659 = vweird.f32 %v653
    %vm660 = vweird.f32 %v654
    %vm661 = vmor %vm659, %vm660
    %v662 = vsel %vm661, %v654, %v658
    %v663 = vand.u32 2147483647, %v653
    %vm664 = vcmp.eq.f32.partialorder %v663, 8.507059e+37
    %v665 = vand.u32 %v653, 2147483648
    %v666 = vor.u32 1.1754944e-38, %v665
    %v667 = vsel %vm664, %v666, %v662
    %v668 = vmul.f32 1.0, %v667
    %v669 = vtanh.pop %v649
    %671 = vrot.lane.b32.xlu0 %v624, 32
    %v672 = vpop.permute.xlu0 %671
    %v674 = vmul.f32 %v668, %v672
    %676 = vrot.lane.b32.xlu0 %v669, 32
    %v677 = vpop.permute.xlu0 %676
    %v679 = vmul.f32 %v668, %v677
    %681 = vrot.lane.b32.xlu0 %v679, 32
    %v682 = vpop.permute.xlu0 %681
    %v684 = vadd.f32 %v674, %v682
    %v685 = vtanh.pop %v684
    %687 = vrot.lane.b32.xlu0 %v685, 32
    %v688 = vpop.permute.xlu0 %687
    %v690 = vmul.f32 %v668, %v688
    %692 = vst [vmem:[#allocation1] ss:$4 sm:$0xff] %v690
    %v693 = vld.sshfl [vmem:[#allocation1] sm:$0xff pattern:$0x73625140]
    %694 = vrot.lane.b32.xlu0 %v693, 64
    %v695 = vpop.permute.xlu0 %694
    %v696 = vsel %vm625, %v695, 0
    %698 = vmatpush.msra.mxu0 0.0
    %699 = vmatpush.msra.mxu0 0.0
    %700 = vmatpush.msra.mxu0 0.0
    %701 = vmatpush.msra.mxu0 0.0
    %702 = vmatpush.msra.mxu0 0.0
    %703 = vmatpush.msra.mxu0 0.0
    %704 = vmatpush.msra.mxu0 0.0
    %705 = vmatpush.msra.mxu0 0.0
    %706 = vmatpush.msra.mxu0 0.0
    %707 = vmatpush.msra.mxu0 0.0
    %708 = vmatpush.msra.mxu0 0.0
    %709 = vmatpush.msra.mxu0 0.0
    %710 = vmatpush.msra.mxu0 %v621
    %711 = vmatpush.msra.mxu0 %v620
    %712 = vmatpush.msra.mxu0 %v619
    %713 = vmatpush.msra.mxu0 %v618
    %714 = vmatmul.f32.gmra.mxu0 %v696
    %v715 = vpop.f32.mrf.mxu0
    %v716 = vadd.f32 0.0, %v715
    %717 = vdwg.mxu0
    %v718 = vadd.f32 %v532, %v716
    %v719 = vxor.u32 %v718, 2147483648
    %v720 = vmul.f32 %v719, 1.442695
    %v721 = vpow.pop %v720
    %v722 = vadd.f32 %v721, 1.0
    %v723 = vrcp.pop %v722
    %v724 = vmul.f32 %v722, %v723
    %v725 = vsub.f32 1.0, %v724
    %v726 = vmul.f32 %v723, %v725
    %v727 = vadd.f32 %v723, %v726
    %vm728 = vweird.f32 %v722
    %vm729 = vweird.f32 %v723
    %vm730 = vmor %vm728, %vm729
    %v731 = vsel %vm730, %v723, %v727
    %v732 = vand.u32 2147483647, %v722
    %vm733 = vcmp.eq.f32.partialorder %v732, 8.507059e+37
    %v734 = vand.u32 %v722, 2147483648
    %v735 = vor.u32 1.1754944e-38, %v734
    %v736 = vsel %vm733, %v735, %v731
    %v737 = vmul.f32 1.0, %v736
    %v738 = vtanh.pop %v718
    %v739 = vmul.f32 %v737, %v684
    %741 = vrot.lane.b32.xlu0 %v738, 32
    %v742 = vpop.permute.xlu0 %741
    %v744 = vmul.f32 %v737, %v742
    %746 = vrot.lane.b32.xlu0 %v744, 32
    %v747 = vpop.permute.xlu0 %746
    %v749 = vadd.f32 %v739, %v747
    %v750 = vtanh.pop %v749
    %752 = vrot.lane.b32.xlu0 %v750, 32
    %v753 = vpop.permute.xlu0 %752
    %v755 = vmul.f32 %v737, %v753
    %757 = vst [vmem:[#allocation1] ss:$4 sm:$0xff] %v755
    %v758 = vld.sshfl [vmem:[#allocation1] sm:$0xff pattern:$0x73625140]
    %759 = vrot.lane.b32.xlu0 %v758, 64
    %v760 = vpop.permute.xlu0 %759
    %v761 = vsel %vm625, %v760, 0
    %763 = vmatpush.msra.mxu0 0.0
    %764 = vmatpush.msra.mxu0 0.0
    %765 = vmatpush.msra.mxu0 0.0
    %766 = vmatpush.msra.mxu0 0.0
    %767 = vmatpush.msra.mxu0 0.0
    %768 = vmatpush.msra.mxu0 0.0
    %769 = vmatpush.msra.mxu0 0.0
    %770 = vmatpush.msra.mxu0 0.0
    %771 = vmatpush.msra.mxu0 0.0
    %772 = vmatpush.msra.mxu0 0.0
    %773 = vmatpush.msra.mxu0 0.0
    %774 = vmatpush.msra.mxu0 0.0
    %775 = vmatpush.msra.mxu0 %v621
    %776 = vmatpush.msra.mxu0 %v620
    %777 = vmatpush.msra.mxu0 %v619
    %778 = vmatpush.msra.mxu0 %v618
    %779 = vmatmul.f32.gmra.mxu0 %v761
    %v780 = vpop.f32.mrf.mxu0
    %v781 = vadd.f32 0.0, %v780
    %782 = vdwg.mxu0
    %v783 = vadd.f32 %v533, %v781
    %v784 = vxor.u32 %v783, 2147483648
    %v785 = vmul.f32 %v784, 1.442695
    %v786 = vpow.pop %v785
    %v787 = vadd.f32 %v786, 1.0
    %v788 = vrcp.pop %v787
    %v789 = vmul.f32 %v787, %v788
    %v790 = vsub.f32 1.0, %v789
    %v791 = vmul.f32 %v788, %v790
    %v792 = vadd.f32 %v788, %v791
    %vm793 = vweird.f32 %v787
    %vm794 = vweird.f32 %v788
    %vm795 = vmor %vm793, %vm794
    %v796 = vsel %vm795, %v788, %v792
    %v797 = vand.u32 2147483647, %v787
    %vm798 = vcmp.eq.f32.partialorder %v797, 8.507059e+37
    %v799 = vand.u32 %v787, 2147483648
    %v800 = vor.u32 1.1754944e-38, %v799
    %v801 = vsel %vm798, %v800, %v796
    %v802 = vmul.f32 1.0, %v801
    %v803 = vtanh.pop %v783
    %v804 = vmul.f32 %v802, %v749
    %806 = vrot.lane.b32.xlu0 %v803, 32
    %v807 = vpop.permute.xlu0 %806
    %v809 = vmul.f32 %v802, %v807
    %811 = vrot.lane.b32.xlu0 %v809, 32
    %v812 = vpop.permute.xlu0 %811
    %v814 = vadd.f32 %v804, %v812
    %v815 = vtanh.pop %v814
    %817 = vrot.lane.b32.xlu0 %v815, 32
    %v818 = vpop.permute.xlu0 %817
    %v820 = vmul.f32 %v802, %v818
    %822 = vst [vmem:[#allocation1] ss:$4 sm:$0xff] %v820
    %v823 = vld.sshfl [vmem:[#allocation1] sm:$0xff pattern:$0x73625140]
    %824 = vrot.lane.b32.xlu0 %v823, 64
    %v825 = vpop.permute.xlu0 %824
    %v826 = vsel %vm625, %v825, 0
    %828 = vmatpush.msra.mxu0 0.0
    %829 = vmatpush.msra.mxu0 0.0
    %830 = vmatpush.msra.mxu0 0.0
    %831 = vmatpush.msra.mxu0 0.0
    %832 = vmatpush.msra.mxu0 0.0
    %833 = vmatpush.msra.mxu0 0.0
    %834 = vmatpush.msra.mxu0 0.0
    %835 = vmatpush.msra.mxu0 0.0
    %836 = vmatpush.msra.mxu0 0.0
    %837 = vmatpush.msra.mxu0 0.0
    %838 = vmatpush.msra.mxu0 0.0
    %839 = vmatpush.msra.mxu0 0.0
    %840 = vmatpush.msra.mxu0 %v621
    %841 = vmatpush.msra.mxu0 %v620
    %842 = vmatpush.msra.mxu0 %v619
    %843 = vmatpush.msra.mxu0 %v618
    %844 = vmatmul.f32.gmra.mxu0 %v826
    %v845 = vpop.f32.mrf.mxu0
    %v846 = vadd.f32 0.0, %v845
    %847 = vdwg.mxu0
    %v848 = vadd.f32 %v534, %v846
    %v849 = vxor.u32 %v848, 2147483648
    %v850 = vmul.f32 %v849, 1.442695
    %v851 = vpow.pop %v850
    %v852 = vadd.f32 %v851, 1.0
    %v853 = vrcp.pop %v852
    %v854 = vmul.f32 %v852, %v853
    %v855 = vsub.f32 1.0, %v854
    %v856 = vmul.f32 %v853, %v855
    %v857 = vadd.f32 %v853, %v856
    %vm858 = vweird.f32 %v852
    %vm859 = vweird.f32 %v853
    %vm860 = vmor %vm858, %vm859
    %v861 = vsel %vm860, %v853, %v857
    %v862 = vand.u32 2147483647, %v852
    %vm863 = vcmp.eq.f32.partialorder %v862, 8.507059e+37
    %v864 = vand.u32 %v852, 2147483648
    %v865 = vor.u32 1.1754944e-38, %v864
    %v866 = vsel %vm863, %v865, %v861
    %v867 = vmul.f32 1.0, %v866
    %v868 = vtanh.pop %v848
    %v869 = vmul.f32 %v867, %v814
    %871 = vrot.lane.b32.xlu0 %v868, 32
    %v872 = vpop.permute.xlu0 %871
    %v874 = vmul.f32 %v867, %v872
    %876 = vrot.lane.b32.xlu0 %v874, 32
    %v877 = vpop.permute.xlu0 %876
    %v879 = vadd.f32 %v869, %v877
    %v880 = vtanh.pop %v879
    %882 = vrot.lane.b32.xlu0 %v880, 32
    %v883 = vpop.permute.xlu0 %882
    %v885 = vmul.f32 %v867, %v883
    %887 = vst [vmem:[#allocation1] ss:$4 sm:$0xff] %v885
    %v888 = vld.sshfl [vmem:[#allocation1] sm:$0xff pattern:$0x73625140]
    %889 = vrot.lane.b32.xlu0 %v888, 64
    %v890 = vpop.permute.xlu0 %889
    %v891 = vsel %vm625, %v890, 0
    %893 = vmatpush.msra.mxu0 0.0
    %894 = vmatpush.msra.mxu0 0.0
    %895 = vmatpush.msra.mxu0 0.0
    %896 = vmatpush.msra.mxu0 0.0
    %897 = vmatpush.msra.mxu0 0.0
    %898 = vmatpush.msra.mxu0 0.0
    %899 = vmatpush.msra.mxu0 0.0
    %900 = vmatpush.msra.mxu0 0.0
    %901 = vmatpush.msra.mxu0 0.0
    %902 = vmatpush.msra.mxu0 0.0
    %903 = vmatpush.msra.mxu0 0.0
    %904 = vmatpush.msra.mxu0 0.0
    %905 = vmatpush.msra.mxu0 %v621
    %906 = vmatpush.msra.mxu0 %v620
    %907 = vmatpush.msra.mxu0 %v619
    %908 = vmatpush.msra.mxu0 %v618
    %909 = vmatmul.f32.gmra.mxu0 %v891
    %v910 = vpop.f32.mrf.mxu0
    %v911 = vadd.f32 0.0, %v910
    %912 = vdwg.mxu0
    %v913 = vadd.f32 %v528, %v911
    %v914 = vxor.u32 %v913, 2147483648
    %v915 = vmul.f32 %v914, 1.442695
    %v916 = vpow.pop %v915
    %v917 = vadd.f32 %v916, 1.0
    %v918 = vrcp.pop %v917
    %v919 = vmul.f32 %v917, %v918
    %v920 = vsub.f32 1.0, %v919
    %v921 = vmul.f32 %v918, %v920
    %v922 = vadd.f32 %v918, %v921
    %vm923 = vweird.f32 %v917
    %vm924 = vweird.f32 %v918
    %vm925 = vmor %vm923, %vm924
    %v926 = vsel %vm925, %v918, %v922
    %v927 = vand.u32 2147483647, %v917
    %vm928 = vcmp.eq.f32.partialorder %v927, 8.507059e+37
    %v929 = vand.u32 %v917, 2147483648
    %v930 = vor.u32 1.1754944e-38, %v929
    %v931 = vsel %vm928, %v930, %v926
    %v932 = vmul.f32 1.0, %v931
    %v933 = vtanh.pop %v913
    %v934 = vmul.f32 %v932, %v879
    %936 = vrot.lane.b32.xlu0 %v933, 32
    %v937 = vpop.permute.xlu0 %936
    %v939 = vmul.f32 %v932, %v937
    %941 = vrot.lane.b32.xlu0 %v939, 32
    %v942 = vpop.permute.xlu0 %941
    %v944 = vadd.f32 %v934, %v942
    %v945 = vtanh.pop %v944
    %947 = vrot.lane.b32.xlu0 %v945, 32
    %v948 = vpop.permute.xlu0 %947
    %v950 = vmul.f32 %v932, %v948
    %952 = vst [vmem:[#allocation1] ss:$4 sm:$0xff] %v950
    %v953 = vld.sshfl [vmem:[#allocation1] sm:$0xff pattern:$0x73625140]
    %954 = vrot.lane.b32.xlu0 %v953, 64
    %v955 = vpop.permute.xlu0 %954
    %v956 = vsel %vm625, %v955, 0
    %958 = vmatpush.msra.mxu0 0.0
    %959 = vmatpush.msra.mxu0 0.0
    %960 = vmatpush.msra.mxu0 0.0
    %961 = vmatpush.msra.mxu0 0.0
    %962 = vmatpush.msra.mxu0 0.0
    %963 = vmatpush.msra.mxu0 0.0
    %964 = vmatpush.msra.mxu0 0.0
    %965 = vmatpush.msra.mxu0 0.0
    %966 = vmatpush.msra.mxu0 0.0
    %967 = vmatpush.msra.mxu0 0.0
    %968 = vmatpush.msra.mxu0 0.0
    %969 = vmatpush.msra.mxu0 0.0
    %970 = vmatpush.msra.mxu0 %v621
    %971 = vmatpush.msra.mxu0 %v620
    %972 = vmatpush.msra.mxu0 %v619
    %973 = vmatpush.msra.mxu0 %v618
    %974 = vmatmul.f32.gmra.mxu0 %v956
    %v975 = vpop.f32.mrf.mxu0
    %v976 = vadd.f32 0.0, %v975
    %977 = vdwg.mxu0
    %v978 = vadd.f32 %v535, %v976
    %v979 = vxor.u32 %v978, 2147483648
    %v980 = vmul.f32 %v979, 1.442695
    %v981 = vpow.pop %v980
    %v982 = vadd.f32 %v981, 1.0
    %v983 = vrcp.pop %v982
    %v984 = vmul.f32 %v982, %v983
    %v985 = vsub.f32 1.0, %v984
    %v986 = vmul.f32 %v983, %v985
    %v987 = vadd.f32 %v983, %v986
    %vm988 = vweird.f32 %v982
    %vm989 = vweird.f32 %v983
    %vm990 = vmor %vm988, %vm989
    %v991 = vsel %vm990, %v983, %v987
    %v992 = vand.u32 2147483647, %v982
    %vm993 = vcmp.eq.f32.partialorder %v992, 8.507059e+37
    %v994 = vand.u32 %v982, 2147483648
    %v995 = vor.u32 1.1754944e-38, %v994
    %v996 = vsel %vm993, %v995, %v991
    %v997 = vmul.f32 1.0, %v996
    %v998 = vtanh.pop %v978
    %v999 = vmul.f32 %v997, %v944
    %1001 = vrot.lane.b32.xlu0 %v998, 32
    %v1002 = vpop.permute.xlu0 %1001
    %v1004 = vmul.f32 %v997, %v1002
    %1006 = vrot.lane.b32.xlu0 %v1004, 32
    %v1007 = vpop.permute.xlu0 %1006
    %v1009 = vadd.f32 %v999, %v1007
    %v1010 = vtanh.pop %v1009
    %1012 = vrot.lane.b32.xlu0 %v1010, 32
    %v1013 = vpop.permute.xlu0 %1012
    %v1015 = vmul.f32 %v997, %v1013
    %1017 = vst [vmem:[#allocation1] ss:$4 sm:$0xff] %v1015
    %v1018 = vld.sshfl [vmem:[#allocation1] sm:$0xff pattern:$0x73625140]
    %1019 = vrot.lane.b32.xlu0 %v1018, 64
    %v1020 = vpop.permute.xlu0 %1019
    %v1021 = vsel %vm625, %v1020, 0
    %1023 = vmatpush.msra.mxu0 0.0
    %1024 = vmatpush.msra.mxu0 0.0
    %1025 = vmatpush.msra.mxu0 0.0
    %1026 = vmatpush.msra.mxu0 0.0
    %1027 = vmatpush.msra.mxu0 0.0
    %1028 = vmatpush.msra.mxu0 0.0
    %1029 = vmatpush.msra.mxu0 0.0
    %1030 = vmatpush.msra.mxu0 0.0
    %1031 = vmatpush.msra.mxu0 0.0
    %1032 = vmatpush.msra.mxu0 0.0
    %1033 = vmatpush.msra.mxu0 0.0
    %1034 = vmatpush.msra.mxu0 0.0
    %1035 = vmatpush.msra.mxu0 %v621
    %1036 = vmatpush.msra.mxu0 %v620
    %1037 = vmatpush.msra.mxu0 %v619
    %1038 = vmatpush.msra.mxu0 %v618
    %1039 = vmatmul.f32.gmra.mxu0 %v1021
    %v1040 = vpop.f32.mrf.mxu0
    %v1041 = vadd.f32 0.0, %v1040
    %1042 = vdwg.mxu0
    %v1043 = vadd.f32 %v536, %v1041
    %v1044 = vxor.u32 %v1043, 2147483648
    %v1045 = vmul.f32 %v1044, 1.442695
    %v1046 = vpow.pop %v1045
    %v1047 = vadd.f32 %v1046, 1.0
    %v1048 = vrcp.pop %v1047
    %v1049 = vmul.f32 %v1047, %v1048
    %v1050 = vsub.f32 1.0, %v1049
    %v1051 = vmul.f32 %v1048, %v1050
    %v1052 = vadd.f32 %v1048, %v1051
    %vm1053 = vweird.f32 %v1047
    %vm1054 = vweird.f32 %v1048
    %vm1055 = vmor %vm1053, %vm1054
    %v1056 = vsel %vm1055, %v1048, %v1052
    %v1057 = vand.u32 2147483647, %v1047
    %vm1058 = vcmp.eq.f32.partialorder %v1057, 8.507059e+37
    %v1059 = vand.u32 %v1047, 2147483648
    %v1060 = vor.u32 1.1754944e-38, %v1059
    %v1061 = vsel %vm1058, %v1060, %v1056
    %v1062 = vmul.f32 1.0, %v1061
    %v1063 = vtanh.pop %v1043
    %v1064 = vmul.f32 %v1062, %v1009
    %1066 = vrot.lane.b32.xlu0 %v1063, 32
    %v1067 = vpop.permute.xlu0 %1066
    %v1069 = vmul.f32 %v1062, %v1067
    %1071 = vrot.lane.b32.xlu0 %v1069, 32
    %v1072 = vpop.permute.xlu0 %1071
    %v1074 = vadd.f32 %v1064, %v1072
    %v1075 = vtanh.pop %v1074
    %1077 = vrot.lane.b32.xlu0 %v1075, 32
    %v1078 = vpop.permute.xlu0 %1077
    %v1080 = vmul.f32 %v1062, %v1078
    %1082 = vst [vmem:[#allocation1] ss:$4 sm:$0xff] %v1080
    %v1083 = vld.sshfl [vmem:[#allocation1] sm:$0xff pattern:$0x73625140]
    %1084 = vrot.lane.b32.xlu0 %v1083, 64
    %v1085 = vpop.permute.xlu0 %1084
    %v1086 = vsel %vm625, %v1085, 0
    %1088 = vmatpush.msra.mxu0 0.0
    %1089 = vmatpush.msra.mxu0 0.0
    %1090 = vmatpush.msra.mxu0 0.0
    %1091 = vmatpush.msra.mxu0 0.0
    %1092 = vmatpush.msra.mxu0 0.0
    %1093 = vmatpush.msra.mxu0 0.0
    %1094 = vmatpush.msra.mxu0 0.0
    %1095 = vmatpush.msra.mxu0 0.0
    %1096 = vmatpush.msra.mxu0 0.0
    %1097 = vmatpush.msra.mxu0 0.0
    %1098 = vmatpush.msra.mxu0 0.0
    %1099 = vmatpush.msra.mxu0 0.0
    %1100 = vmatpush.msra.mxu0 %v621
    %1101 = vmatpush.msra.mxu0 %v620
    %1102 = vmatpush.msra.mxu0 %v619
    %1103 = vmatpush.msra.mxu0 %v618
    %1104 = vmatmul.f32.gmra.mxu0 %v1086
    %v1105 = vpop.f32.mrf.mxu0
    %v1106 = vadd.f32 0.0, %v1105
    %1107 = vdwg.mxu0
    %v1108 = vadd.f32 %v537, %v1106
    %v1109 = vxor.u32 %v1108, 2147483648
    %v1110 = vmul.f32 %v1109, 1.442695
    %v1111 = vpow.pop %v1110
    %v1112 = vadd.f32 %v1111, 1.0
    %v1113 = vrcp.pop %v1112
    %v1114 = vmul.f32 %v1112, %v1113
    %v1115 = vsub.f32 1.0, %v1114
    %v1116 = vmul.f32 %v1113, %v1115
    %v1117 = vadd.f32 %v1113, %v1116
    %vm1118 = vweird.f32 %v1112
    %vm1119 = vweird.f32 %v1113
    %vm1120 = vmor %vm1118, %vm1119
    %v1121 = vsel %vm1120, %v1113, %v1117
    %v1122 = vand.u32 2147483647, %v1112
    %vm1123 = vcmp.eq.f32.partialorder %v1122, 8.507059e+37
    %v1124 = vand.u32 %v1112, 2147483648
    %v1125 = vor.u32 1.1754944e-38, %v1124
    %v1126 = vsel %vm1123, %v1125, %v1121
    %v1127 = vmul.f32 1.0, %v1126
    %v1128 = vtanh.pop %v1108
    %v1129 = vmul.f32 %v1127, %v1074
    %1131 = vrot.lane.b32.xlu0 %v1128, 32
    %v1132 = vpop.permute.xlu0 %1131
    %v1134 = vmul.f32 %v1127, %v1132
    %1136 = vrot.lane.b32.xlu0 %v1134, 32
    %v1137 = vpop.permute.xlu0 %1136
    %v1139 = vadd.f32 %v1129, %v1137
    %v1140 = vtanh.pop %v1139
    %1142 = vrot.lane.b32.xlu0 %v1140, 32
    %v1143 = vpop.permute.xlu0 %1142
    %v1145 = vmul.f32 %v1127, %v1143
    %v1146 = vld [vmem:[#allocation3 + $0x30] sm:$0xff]
    %v1147 = vld [vmem:[#allocation3 + $0x38] sm:$0xff]
    %v1148 = vld [vmem:[#allocation3 + $0x40] sm:$0xff]
    %v1149 = vld [vmem:[#allocation3 + $0x48] sm:$0xff]
    %v1150 = vrot.slane %v690, 1
    %v1151 = vrot.slane %v690, 2
    %v1152 = vrot.slane %v690, 3
    %vm1153 = vcmask 1040384
    %v1154 = vsel %vm1153, %v690, %v1150
    %vm1155 = vcmask 1042434
    %v1156 = vsel %vm1155, %v1151, %v1152
    %v1157 = vsel %vm89, %v1154, %v1156
    %vm1158 = vcmask 1041409
    %v1159 = vsel %vm1158, %v690, %v1150
    %vm1160 = vcmask 1043459
    %v1161 = vsel %vm1160, %v1151, %v1152
    %vm1162 = vcmask 1042433
    %v1163 = vsel %vm1162, %v1159, %v1161
    %v1164 = vrot.slane %v1163, 1
    %v1167 = vrot.slane %v755, 1
    %v1168 = vrot.slane %v755, 2
    %v1169 = vrot.slane %v755, 3
    %v1170 = vsel %vm1153, %v755, %v1167
    %v1171 = vsel %vm1155, %v1168, %v1169
    %v1172 = vsel %vm89, %v1170, %v1171
    %v1173 = vsel %vm1158, %v755, %v1167
    %v1174 = vsel %vm1160, %v1168, %v1169
    %v1175 = vsel %vm1162, %v1173, %v1174
    %v1176 = vrot.slane %v1175, 1
    %v1177 = vrot.slane %v820, 1
    %v1178 = vrot.slane %v820, 2
    %v1179 = vrot.slane %v820, 3
    %v1180 = vsel %vm1153, %v820, %v1177
    %v1181 = vsel %vm1155, %v1178, %v1179
    %v1182 = vsel %vm89, %v1180, %v1181
    %v1183 = vsel %vm1158, %v820, %v1177
    %v1184 = vsel %vm1160, %v1178, %v1179
    %v1185 = vsel %vm1162, %v1183, %v1184
    %v1186 = vrot.slane %v1185, 1
    %v1187 = vrot.slane %v885, 1
    %v1188 = vrot.slane %v885, 2
    %v1189 = vrot.slane %v885, 3
    %v1190 = vsel %vm1153, %v885, %v1187
    %v1191 = vsel %vm1155, %v1188, %v1189
    %v1192 = vsel %vm89, %v1190, %v1191
    %v1193 = vsel %vm1158, %v885, %v1187
    %v1194 = vsel %vm1160, %v1188, %v1189
    %v1195 = vsel %vm1162, %v1193, %v1194
    %v1196 = vrot.slane %v1195, 1
    %v1197 = vrot.slane %v950, 1
    %v1198 = vrot.slane %v950, 2
    %v1199 = vrot.slane %v950, 3
    %v1200 = vsel %vm1153, %v950, %v1197
    %v1201 = vsel %vm1155, %v1198, %v1199
    %v1202 = vsel %vm89, %v1200, %v1201
    %v1203 = vsel %vm1158, %v950, %v1197
    %v1204 = vsel %vm1160, %v1198, %v1199
    %v1205 = vsel %vm1162, %v1203, %v1204
    %v1206 = vrot.slane %v1205, 1
    %v1207 = vrot.slane %v1015, 1
    %v1208 = vrot.slane %v1015, 2
    %v1209 = vrot.slane %v1015, 3
    %v1210 = vsel %vm1153, %v1015, %v1207
    %v1211 = vsel %vm1155, %v1208, %v1209
    %v1212 = vsel %vm89, %v1210, %v1211
    %v1213 = vsel %vm1158, %v1015, %v1207
    %v1214 = vsel %vm1160, %v1208, %v1209
    %v1215 = vsel %vm1162, %v1213, %v1214
    %v1216 = vrot.slane %v1215, 1
    %v1217 = vrot.slane %v1080, 1
    %v1218 = vrot.slane %v1080, 2
    %v1219 = vrot.slane %v1080, 3
    %v1220 = vsel %vm1153, %v1080, %v1217
    %v1221 = vsel %vm1155, %v1218, %v1219
    %v1222 = vsel %vm89, %v1220, %v1221
    %v1223 = vsel %vm1158, %v1080, %v1217
    %v1224 = vsel %vm1160, %v1218, %v1219
    %v1225 = vsel %vm1162, %v1223, %v1224
    %v1226 = vrot.slane %v1225, 1
    %v1228 = vrot.slane %v1145, 1
    %v1229 = vrot.slane %v1145, 2
    %v1230 = vrot.slane %v1145, 3
    %v1231 = vsel %vm1153, %v1145, %v1228
    %v1232 = vsel %vm1155, %v1229, %v1230
    %v1233 = vsel %vm89, %v1231, %v1232
    %v1234 = vsel %vm1158, %v1145, %v1228
    %v1235 = vsel %vm1160, %v1229, %v1230
    %v1236 = vsel %vm1162, %v1234, %v1235
    %v1237 = vrot.slane %v1236, 1
    %v1238 = vperm.slane %v1172, 0
    %v1239 = vperm.slane %v1176, 0
    %v1242 = vperm.slane %v1182, 0
    %v1243 = vperm.slane %v1186, 0
    %v1246 = vperm.slane %v1192, 0
    %v1247 = vperm.slane %v1196, 0
    %v1250 = vperm.slane %v1202, 0
    %v1251 = vperm.slane %v1206, 0
    %v1254 = vperm.slane %v1212, 0
    %v1255 = vperm.slane %v1216, 0
    %v1258 = vperm.slane %v1222, 0
    %v1259 = vperm.slane %v1226, 0
    %v1262 = vperm.slane %v1233, 0
    %v1263 = vperm.slane %v1237, 0
    %v1266 = vsel %vm1153, %v1157, %v1238
    %v1267 = vsel %vm1153, %v1164, %v1239
    %v1268 = vsel %vm89, %v1266, %v1242
    %v1269 = vsel %vm89, %v1267, %v1243
    %vm1270 = vcmask 1042432
    %v1271 = vsel %vm1270, %v1268, %v1246
    %v1272 = vsel %vm1270, %v1269, %v1247
    %v1273 = vsel %vm558, %v1271, %v1250
    %v1274 = vsel %vm558, %v1272, %v1251
    %vm1275 = vcmask 1044480
    %v1276 = vsel %vm1275, %v1273, %v1254
    %v1277 = vsel %vm1275, %v1274, %v1255
    %v1278 = vsel %vm615, %v1276, %v1258
    %v1279 = vsel %vm615, %v1277, %v1259
    %vm1280 = vcmask 1046528
    %v1281 = vsel %vm1280, %v1278, %v1262
    %v1282 = vsel %vm1280, %v1279, %v1263
    %1285 = vrot.lane.b32.xlu0 %v1281, 64
    %v1286 = vpop.permute.xlu0 %1285
    %1287 = vrot.lane.b32.xlu0 %v1282, 64
    %v1288 = vpop.permute.xlu0 %1287
    %v1289 = vsel %vm625, %v1286, 0
    %v1291 = vsel %vm625, %v1288, 0
    %1293 = vmatpush.msra.mxu0 0.0
    %1294 = vmatpush.msra.mxu0 0.0
    %1295 = vmatpush.msra.mxu0 0.0
    %1296 = vmatpush.msra.mxu0 0.0
    %1297 = vmatpush.msra.mxu0 0.0
    %1298 = vmatpush.msra.mxu0 0.0
    %1299 = vmatpush.msra.mxu0 0.0
    %1300 = vmatpush.msra.mxu0 0.0
    %1301 = vmatpush.msra.mxu0 0.0
    %1302 = vmatpush.msra.mxu0 0.0
    %1303 = vmatpush.msra.mxu0 0.0
    %1304 = vmatpush.msra.mxu0 0.0
    %1305 = vmatpush.msra.mxu0 %v1149
    %1306 = vmatpush.msra.mxu0 %v1148
    %1307 = vmatpush.msra.mxu0 %v1147
    %1308 = vmatpush.msra.mxu0 %v1146
    %1309 = vmatmul.f32.gmra.mxu0 %v1289
    %v1310 = vpop.f32.mrf.mxu0
    %v1311 = vadd.f32 0.0, %v1310
    %1312 = vmatmul.f32.gmra.mxu0 %v1291
    %v1313 = vpop.f32.mrf.mxu0
    %v1314 = vadd.f32 0.0, %v1313
    %1315 = vdwg.mxu0
    %v1316 = vld [vmem:[#allocation6] sm:$0xff]
    %v1317 = vld [vmem:[#allocation6 + $0x8] sm:$0xff]
    %v1318 = vld [vmem:[#allocation6 + $0x10] sm:$0xff]
    %v1319 = vld [vmem:[#allocation6 + $0x18] sm:$0xff]
    %v1320 = vld [vmem:[#allocation6 + $0x20] sm:$0xff]
    %v1321 = vld [vmem:[#allocation6 + $0x28] sm:$0xff]
    %v1322 = vld [vmem:[#allocation6 + $0x30] sm:$0xff]
    %v1323 = vld [vmem:[#allocation6 + $0x38] sm:$0xff]
    %1324 = vst [vmem:[#allocation1] ss:$4 sm:$0xff] %v1145
    %v1325 = vld.sshfl [vmem:[#allocation1] sm:$0xff pattern:$0x73625140]
    %1326 = vrot.lane.b32.xlu0 %v1325, 64
    %v1327 = vpop.permute.xlu0 %1326
    %1328 = vst [vmem:[#allocation1] ss:$4 sm:$0xff] %v608
    %v1329 = vld.sshfl [vmem:[#allocation1] sm:$0xff pattern:$0x73625140]
    %v1330 = vld.sshfl [vmem:[#allocation1 + $0x8] sm:$0xff pattern:$0x73625140]
    %v1333 = vsel %vm625, %v1327, 0
    %1335 = vmatpush.msra.mxu0 0.0
    %1336 = vmatpush.msra.mxu0 0.0
    %1337 = vmatpush.msra.mxu0 0.0
    %1338 = vmatpush.msra.mxu0 0.0
    %1339 = vmatpush.msra.mxu0 0.0
    %1340 = vmatpush.msra.mxu0 0.0
    %1341 = vmatpush.msra.mxu0 0.0
    %1342 = vmatpush.msra.mxu0 0.0
    %1343 = vmatpush.msra.mxu0 0.0
    %1344 = vmatpush.msra.mxu0 0.0
    %1345 = vmatpush.msra.mxu0 0.0
    %1346 = vmatpush.msra.mxu0 0.0
    %1347 = vmatpush.msra.mxu0 %v1322
    %1348 = vmatpush.msra.mxu0 %v1320
    %1349 = vmatpush.msra.mxu0 %v1318
    %1350 = vmatpush.msra.mxu0 %v1316
    %1351 = vmatmul.f32.gmra.mxu0 %v1333
    %v1352 = vpop.f32.mrf.mxu0
    %v1353 = vadd.f32 %v1329, %v1352
    %1354 = vdwg.mxu0
    %1355 = vmatpush.msra.mxu0 0.0
    %1356 = vmatpush.msra.mxu0 0.0
    %1357 = vmatpush.msra.mxu0 0.0
    %1358 = vmatpush.msra.mxu0 0.0
    %1359 = vmatpush.msra.mxu0 0.0
    %1360 = vmatpush.msra.mxu0 0.0
    %1361 = vmatpush.msra.mxu0 0.0
    %1362 = vmatpush.msra.mxu0 0.0
    %1363 = vmatpush.msra.mxu0 0.0
    %1364 = vmatpush.msra.mxu0 0.0
    %1365 = vmatpush.msra.mxu0 0.0
    %1366 = vmatpush.msra.mxu0 0.0
    %1367 = vmatpush.msra.mxu0 %v1323
    %1368 = vmatpush.msra.mxu0 %v1321
    %1369 = vmatpush.msra.mxu0 %v1319
    %1370 = vmatpush.msra.mxu0 %v1317
    %1371 = vmatmul.f32.gmra.mxu0 %v1333
    %v1372 = vpop.f32.mrf.mxu0
    %v1373 = vadd.f32 %v1330, %v1372
    %1374 = vdwg.mxu0
    %v1375 = vsel %vm64, %v1373, -inf
    %1376 = vmax.xlane.f32.xlu0 %v1375
    %v1377 = vpop.xlane.xlu0 %1376
    %v1378 = vsub.f32 %v1373, %v1377
    %v1379 = vmul.f32 %v1378, 1.442695
    %v1380 = vpow.pop %v1379
    %v1381 = vsel %vm64, %v1380, 0.0
    %1382 = vadd.xlane.f32.xlu0 %v1381
    %v1383 = vpop.xlane.xlu0 %1382
    %v1384 = vrcp.pop %v1383
    %v1385 = vmul.f32 %v1380, %v1384
    %v1386 = vperm.slane %v1385, 0
    %v1387 = vlaneseq
    %v1388 = vshrl.u32 %v1387, 7
    %1390 = vset.pattern.permute.xlu0 %v1388
    %1391 = vperm.xlu0 %1390, %v1386
    %v1392 = vpop.permute.xlu0 %1391
    %v1393 = vperm.slane %v1385, 1
    %v1394 = vlaneseq
    %v1395 = vshrl.u32 %v1394, 7
    %1397 = vset.pattern.permute.xlu0 %v1395
    %1398 = vperm.xlu0 %1397, %v1393
    %v1399 = vpop.permute.xlu0 %1398
    %v1400 = vmul.f32 %v1392, %v1311
    %v1401 = vmul.f32 %v1399, %v1314
    %v1402 = vrot.slane %v1400, 4
    %v1403 = vadd.f32 %v1400, %v1402
    %v1404 = vrot.slane %v1403, 2
    %v1405 = vadd.f32 %v1403, %v1404
    %v1406 = vrot.slane %v1405, 1
    %v1407 = vadd.f32 %v1405, %v1406
    %v1408 = vrot.slane %v1401, 4
    %v1409 = vadd.f32 %v1401, %v1408
    %v1410 = vrot.slane %v1409, 2
    %v1411 = vadd.f32 %v1409, %v1410
    %v1412 = vrot.slane %v1411, 1
    %v1413 = vadd.f32 %v1411, %v1412
    %v1416 = vsel %vm1158, %v1413, %v1407
    %v1418 = vadd.f32 %v1353, %v1416
    %v1419 = vxor.u32 %v1418, 2147483648
    %v1420 = vmul.f32 %v1419, 1.442695
    %v1421 = vpow.pop %v1420
    %v1422 = vadd.f32 %v1421, 1.0
    %v1423 = vrcp.pop %v1422
    %v1424 = vmul.f32 %v1422, %v1423
    %v1425 = vsub.f32 1.0, %v1424
    %v1426 = vmul.f32 %v1423, %v1425
    %v1427 = vadd.f32 %v1423, %v1426
    %vm1428 = vweird.f32 %v1422
    %vm1429 = vweird.f32 %v1423
    %vm1430 = vmor %vm1428, %vm1429
    %v1431 = vsel %vm1430, %v1423, %v1427
    %v1432 = vand.u32 2147483647, %v1422
    %vm1433 = vcmp.eq.f32.partialorder %v1432, 8.507059e+37
    %v1434 = vand.u32 %v1422, 2147483648
    %v1435 = vor.u32 1.1754944e-38, %v1434
    %v1436 = vsel %vm1433, %v1435, %v1431
    %v1437 = vmul.f32 1.0, %v1436
    %v1438 = vtanh.pop %v1418
    %v1439 = vmul.f32 %v1437, %v1139
    %1441 = vrot.lane.b32.xlu0 %v1438, 32
    %v1442 = vpop.permute.xlu0 %1441
    %v1444 = vmul.f32 %v1437, %v1442
    %1446 = vrot.lane.b32.xlu0 %v1444, 32
    %v1447 = vpop.permute.xlu0 %1446
    %v1449 = vadd.f32 %v1439, %v1447
    %v1450 = vtanh.pop %v1449
    %1452 = vrot.lane.b32.xlu0 %v1450, 32
    %v1453 = vpop.permute.xlu0 %1452
    %v1455 = vmul.f32 %v1437, %v1453
    %1457 = vrot.lane.b32.xlu0 %v1455, 64
    %v1458 = vpop.permute.xlu0 %1457
    %vm1460 = vcmask 254976
    %1461 = vst.msk [vmem:[#allocation2] sm:$0x3] %vm1460, %v1458
    %1462 = vst [vmem:[#allocation1] ss:$4 sm:$0xff] %v611
    %v1463 = vld.sshfl [vmem:[#allocation1] sm:$0xff pattern:$0x73625140]
    %v1464 = vld.sshfl [vmem:[#allocation1 + $0x8] sm:$0xff pattern:$0x73625140]
    %v1467 = vsel %vm625, %v1458, 0
    %1469 = vmatpush.msra.mxu0 0.0
    %1470 = vmatpush.msra.mxu0 0.0
    %1471 = vmatpush.msra.mxu0 0.0
    %1472 = vmatpush.msra.mxu0 0.0
    %1473 = vmatpush.msra.mxu0 0.0
    %1474 = vmatpush.msra.mxu0 0.0
    %1475 = vmatpush.msra.mxu0 0.0
    %1476 = vmatpush.msra.mxu0 0.0
    %1477 = vmatpush.msra.mxu0 0.0
    %1478 = vmatpush.msra.mxu0 0.0
    %1479 = vmatpush.msra.mxu0 0.0
    %1480 = vmatpush.msra.mxu0 0.0
    %1481 = vmatpush.msra.mxu0 %v1322
    %1482 = vmatpush.msra.mxu0 %v1320
    %1483 = vmatpush.msra.mxu0 %v1318
    %1484 = vmatpush.msra.mxu0 %v1316
    %1485 = vmatmul.f32.gmra.mxu0 %v1467
    %v1486 = vpop.f32.mrf.mxu0
    %v1487 = vadd.f32 %v1463, %v1486
    %1488 = vdwg.mxu0
    %1489 = vmatpush.msra.mxu0 0.0
    %1490 = vmatpush.msra.mxu0 0.0
    %1491 = vmatpush.msra.mxu0 0.0
    %1492 = vmatpush.msra.mxu0 0.0
    %1493 = vmatpush.msra.mxu0 0.0
    %1494 = vmatpush.msra.mxu0 0.0
    %1495 = vmatpush.msra.mxu0 0.0
    %1496 = vmatpush.msra.mxu0 0.0
    %1497 = vmatpush.msra.mxu0 0.0
    %1498 = vmatpush.msra.mxu0 0.0
    %1499 = vmatpush.msra.mxu0 0.0
    %1500 = vmatpush.msra.mxu0 0.0
    %1501 = vmatpush.msra.mxu0 %v1323
    %1502 = vmatpush.msra.mxu0 %v1321
    %1503 = vmatpush.msra.mxu0 %v1319
    %1504 = vmatpush.msra.mxu0 %v1317
    %1505 = vmatmul.f32.gmra.mxu0 %v1467
    %v1506 = vpop.f32.mrf.mxu0
    %v1507 = vadd.f32 %v1464, %v1506
    %1508 = vdwg.mxu0
    %v1509 = vsel %vm64, %v1507, -inf
    %1510 = vmax.xlane.f32.xlu0 %v1509
    %v1511 = vpop.xlane.xlu0 %1510
    %v1512 = vsub.f32 %v1507, %v1511
    %v1513 = vmul.f32 %v1512, 1.442695
    %v1514 = vpow.pop %v1513
    %v1515 = vsel %vm64, %v1514, 0.0
    %1516 = vadd.xlane.f32.xlu0 %v1515
    %v1517 = vpop.xlane.xlu0 %1516
    %v1518 = vrcp.pop %v1517
    %v1519 = vmul.f32 %v1514, %v1518
    %v1520 = vperm.slane %v1519, 0
    %v1521 = vlaneseq
    %v1522 = vshrl.u32 %v1521, 7
    %1524 = vset.pattern.permute.xlu0 %v1522
    %1525 = vperm.xlu0 %1524, %v1520
    %v1526 = vpop.permute.xlu0 %1525
    %v1527 = vperm.slane %v1519, 1
    %v1528 = vlaneseq
    %v1529 = vshrl.u32 %v1528, 7
    %1531 = vset.pattern.permute.xlu0 %v1529
    %1532 = vperm.xlu0 %1531, %v1527
    %v1533 = vpop.permute.xlu0 %1532
    %v1534 = vmul.f32 %v1526, %v1311
    %v1535 = vmul.f32 %v1533, %v1314
    %v1536 = vrot.slane %v1534, 4
    %v1537 = vadd.f32 %v1534, %v1536
    %v1538 = vrot.slane %v1537, 2
    %v1539 = vadd.f32 %v1537, %v1538
    %v1540 = vrot.slane %v1539, 1
    %v1541 = vadd.f32 %v1539, %v1540
    %v1542 = vrot.slane %v1535, 4
    %v1543 = vadd.f32 %v1535, %v1542
    %v1544 = vrot.slane %v1543, 2
    %v1545 = vadd.f32 %v1543, %v1544
    %v1546 = vrot.slane %v1545, 1
    %v1547 = vadd.f32 %v1545, %v1546
    %v1550 = vsel %vm1158, %v1547, %v1541
    %v1552 = vadd.f32 %v1487, %v1550
    %v1553 = vxor.u32 %v1552, 2147483648
    %v1554 = vmul.f32 %v1553, 1.442695
    %v1555 = vpow.pop %v1554
    %v1556 = vadd.f32 %v1555, 1.0
    %v1557 = vrcp.pop %v1556
    %v1558 = vmul.f32 %v1556, %v1557
    %v1559 = vsub.f32 1.0, %v1558
    %v1560 = vmul.f32 %v1557, %v1559
    %v1561 = vadd.f32 %v1557, %v1560
    %vm1562 = vweird.f32 %v1556
    %vm1563 = vweird.f32 %v1557
    %vm1564 = vmor %vm1562, %vm1563
    %v1565 = vsel %vm1564, %v1557, %v1561
    %v1566 = vand.u32 2147483647, %v1556
    %vm1567 = vcmp.eq.f32.partialorder %v1566, 8.507059e+37
    %v1568 = vand.u32 %v1556, 2147483648
    %v1569 = vor.u32 1.1754944e-38, %v1568
    %v1570 = vsel %vm1567, %v1569, %v1565
    %v1571 = vmul.f32 1.0, %v1570
    %v1572 = vtanh.pop %v1552
    %v1573 = vmul.f32 %v1571, %v1449
    %1575 = vrot.lane.b32.xlu0 %v1572, 32
    %v1576 = vpop.permute.xlu0 %1575
    %v1578 = vmul.f32 %v1571, %v1576
    %1580 = vrot.lane.b32.xlu0 %v1578, 32
    %v1581 = vpop.permute.xlu0 %1580
    %v1583 = vadd.f32 %v1573, %v1581
    %v1584 = vtanh.pop %v1583
    %1586 = vrot.lane.b32.xlu0 %v1584, 32
    %v1587 = vpop.permute.xlu0 %1586
    %v1589 = vmul.f32 %v1571, %v1587
    %1591 = vrot.lane.b32.xlu0 %v1589, 64
    %v1592 = vpop.permute.xlu0 %1591
    %s1594 = scalar_lea.vmem [#allocation2], 2
    %1595 = vst.msk [vmem:[%s1594] sm:$0x3] %vm1460, %v1592
    %1596 = vst [vmem:[#allocation1] ss:$4 sm:$0xff] %v614
    %v1597 = vld.sshfl [vmem:[#allocation1] sm:$0xff pattern:$0x73625140]
    %v1598 = vld.sshfl [vmem:[#allocation1 + $0x8] sm:$0xff pattern:$0x73625140]
    %v1601 = vsel %vm625, %v1592, 0
    %1603 = vmatpush.msra.mxu0 0.0
    %1604 = vmatpush.msra.mxu0 0.0
    %1605 = vmatpush.msra.mxu0 0.0
    %1606 = vmatpush.msra.mxu0 0.0
    %1607 = vmatpush.msra.mxu0 0.0
    %1608 = vmatpush.msra.mxu0 0.0
    %1609 = vmatpush.msra.mxu0 0.0
    %1610 = vmatpush.msra.mxu0 0.0
    %1611 = vmatpush.msra.mxu0 0.0
    %1612 = vmatpush.msra.mxu0 0.0
    %1613 = vmatpush.msra.mxu0 0.0
    %1614 = vmatpush.msra.mxu0 0.0
    %1615 = vmatpush.msra.mxu0 %v1322
    %1616 = vmatpush.msra.mxu0 %v1320
    %1617 = vmatpush.msra.mxu0 %v1318
    %1618 = vmatpush.msra.mxu0 %v1316
    %1619 = vmatmul.f32.gmra.mxu0 %v1601
    %v1620 = vpop.f32.mrf.mxu0
    %v1621 = vadd.f32 %v1597, %v1620
    %1622 = vdwg.mxu0
    %1623 = vmatpush.msra.mxu0 0.0
    %1624 = vmatpush.msra.mxu0 0.0
    %1625 = vmatpush.msra.mxu0 0.0
    %1626 = vmatpush.msra.mxu0 0.0
    %1627 = vmatpush.msra.mxu0 0.0
    %1628 = vmatpush.msra.mxu0 0.0
    %1629 = vmatpush.msra.mxu0 0.0
    %1630 = vmatpush.msra.mxu0 0.0
    %1631 = vmatpush.msra.mxu0 0.0
    %1632 = vmatpush.msra.mxu0 0.0
    %1633 = vmatpush.msra.mxu0 0.0
    %1634 = vmatpush.msra.mxu0 0.0
    %1635 = vmatpush.msra.mxu0 %v1323
    %1636 = vmatpush.msra.mxu0 %v1321
    %1637 = vmatpush.msra.mxu0 %v1319
    %1638 = vmatpush.msra.mxu0 %v1317
    %1639 = vmatmul.f32.gmra.mxu0 %v1601
    %v1640 = vpop.f32.mrf.mxu0
    %v1641 = vadd.f32 %v1598, %v1640
    %1642 = vdwg.mxu0
    %v1643 = vsel %vm64, %v1641, -inf
    %1644 = vmax.xlane.f32.xlu0 %v1643
    %v1645 = vpop.xlane.xlu0 %1644
    %v1646 = vsub.f32 %v1641, %v1645
    %v1647 = vmul.f32 %v1646, 1.442695
    %v1648 = vpow.pop %v1647
    %v1649 = vsel %vm64, %v1648, 0.0
    %1650 = vadd.xlane.f32.xlu0 %v1649
    %v1651 = vpop.xlane.xlu0 %1650
    %v1652 = vrcp.pop %v1651
    %v1653 = vmul.f32 %v1648, %v1652
    %v1654 = vperm.slane %v1653, 0
    %v1655 = vlaneseq
    %v1656 = vshrl.u32 %v1655, 7
    %1658 = vset.pattern.permute.xlu0 %v1656
    %1659 = vperm.xlu0 %1658, %v1654
    %v1660 = vpop.permute.xlu0 %1659
    %v1661 = vperm.slane %v1653, 1
    %v1662 = vlaneseq
    %v1663 = vshrl.u32 %v1662, 7
    %1665 = vset.pattern.permute.xlu0 %v1663
    %1666 = vperm.xlu0 %1665, %v1661
    %v1667 = vpop.permute.xlu0 %1666
    %v1668 = vmul.f32 %v1660, %v1311
    %v1669 = vmul.f32 %v1667, %v1314
    %v1670 = vrot.slane %v1668, 4
    %v1671 = vadd.f32 %v1668, %v1670
    %v1672 = vrot.slane %v1671, 2
    %v1673 = vadd.f32 %v1671, %v1672
    %v1674 = vrot.slane %v1673, 1
    %v1675 = vadd.f32 %v1673, %v1674
    %v1676 = vrot.slane %v1669, 4
    %v1677 = vadd.f32 %v1669, %v1676
    %v1678 = vrot.slane %v1677, 2
    %v1679 = vadd.f32 %v1677, %v1678
    %v1680 = vrot.slane %v1679, 1
    %v1681 = vadd.f32 %v1679, %v1680
    %v1684 = vsel %vm1158, %v1681, %v1675
    %v1686 = vadd.f32 %v1621, %v1684
    %v1687 = vxor.u32 %v1686, 2147483648
    %v1688 = vmul.f32 %v1687, 1.442695
    %v1689 = vpow.pop %v1688
    %v1690 = vadd.f32 %v1689, 1.0
    %v1691 = vrcp.pop %v1690
    %v1692 = vmul.f32 %v1690, %v1691
    %v1693 = vsub.f32 1.0, %v1692
    %v1694 = vmul.f32 %v1691, %v1693
    %v1695 = vadd.f32 %v1691, %v1694
    %vm1696 = vweird.f32 %v1690
    %vm1697 = vweird.f32 %v1691
    %vm1698 = vmor %vm1696, %vm1697
    %v1699 = vsel %vm1698, %v1691, %v1695
    %v1700 = vand.u32 2147483647, %v1690
    %vm1701 = vcmp.eq.f32.partialorder %v1700, 8.507059e+37
    %v1702 = vand.u32 %v1690, 2147483648
    %v1703 = vor.u32 1.1754944e-38, %v1702
    %v1704 = vsel %vm1701, %v1703, %v1699
    %v1705 = vmul.f32 1.0, %v1704
    %v1706 = vtanh.pop %v1686
    %v1707 = vmul.f32 %v1705, %v1583
    %1709 = vrot.lane.b32.xlu0 %v1706, 32
    %v1710 = vpop.permute.xlu0 %1709
    %v1712 = vmul.f32 %v1705, %v1710
    %1714 = vrot.lane.b32.xlu0 %v1712, 32
    %v1715 = vpop.permute.xlu0 %1714
    %v1717 = vadd.f32 %v1707, %v1715
    %v1718 = vtanh.pop %v1717
    %1720 = vrot.lane.b32.xlu0 %v1718, 32
    %v1721 = vpop.permute.xlu0 %1720
    %v1723 = vmul.f32 %v1705, %v1721
    %1725 = vrot.lane.b32.xlu0 %v1723, 64
    %v1726 = vpop.permute.xlu0 %1725
    %s1728 = scalar_lea.vmem [#allocation2], 4
    %1729 = vst.msk [vmem:[%s1728] sm:$0x3] %vm1460, %v1726
    %1730 = vst [vmem:[#allocation1] ss:$4 sm:$0xff] %v617
    %v1731 = vld.sshfl [vmem:[#allocation1] sm:$0xff pattern:$0x73625140]
    %v1732 = vld.sshfl [vmem:[#allocation1 + $0x8] sm:$0xff pattern:$0x73625140]
    %v1735 = vsel %vm625, %v1726, 0
    %1737 = vmatpush.msra.mxu0 0.0
    %1738 = vmatpush.msra.mxu0 0.0
    %1739 = vmatpush.msra.mxu0 0.0
    %1740 = vmatpush.msra.mxu0 0.0
    %1741 = vmatpush.msra.mxu0 0.0
    %1742 = vmatpush.msra.mxu0 0.0
    %1743 = vmatpush.msra.mxu0 0.0
    %1744 = vmatpush.msra.mxu0 0.0
    %1745 = vmatpush.msra.mxu0 0.0
    %1746 = vmatpush.msra.mxu0 0.0
    %1747 = vmatpush.msra.mxu0 0.0
    %1748 = vmatpush.msra.mxu0 0.0
    %1749 = vmatpush.msra.mxu0 %v1322
    %1750 = vmatpush.msra.mxu0 %v1320
    %1751 = vmatpush.msra.mxu0 %v1318
    %1752 = vmatpush.msra.mxu0 %v1316
    %1753 = vmatmul.f32.gmra.mxu0 %v1735
    %v1754 = vpop.f32.mrf.mxu0
    %v1755 = vadd.f32 %v1731, %v1754
    %1756 = vdwg.mxu0
    %1757 = vmatpush.msra.mxu0 0.0
    %1758 = vmatpush.msra.mxu0 0.0
    %1759 = vmatpush.msra.mxu0 0.0
    %1760 = vmatpush.msra.mxu0 0.0
    %1761 = vmatpush.msra.mxu0 0.0
    %1762 = vmatpush.msra.mxu0 0.0
    %1763 = vmatpush.msra.mxu0 0.0
    %1764 = vmatpush.msra.mxu0 0.0
    %1765 = vmatpush.msra.mxu0 0.0
    %1766 = vmatpush.msra.mxu0 0.0
    %1767 = vmatpush.msra.mxu0 0.0
    %1768 = vmatpush.msra.mxu0 0.0
    %1769 = vmatpush.msra.mxu0 %v1323
    %1770 = vmatpush.msra.mxu0 %v1321
    %1771 = vmatpush.msra.mxu0 %v1319
    %1772 = vmatpush.msra.mxu0 %v1317
    %1773 = vmatmul.f32.gmra.mxu0 %v1735
    %v1774 = vpop.f32.mrf.mxu0
    %v1775 = vadd.f32 %v1732, %v1774
    %1776 = vdwg.mxu0
    %v1777 = vsel %vm64, %v1775, -inf
    %1778 = vmax.xlane.f32.xlu0 %v1777
    %v1779 = vpop.xlane.xlu0 %1778
    %v1780 = vsub.f32 %v1775, %v1779
    %v1781 = vmul.f32 %v1780, 1.442695
    %v1782 = vpow.pop %v1781
    %v1783 = vsel %vm64, %v1782, 0.0
    %1784 = vadd.xlane.f32.xlu0 %v1783
    %v1785 = vpop.xlane.xlu0 %1784
    %v1786 = vrcp.pop %v1785
    %v1787 = vmul.f32 %v1782, %v1786
    %v1788 = vperm.slane %v1787, 0
    %v1789 = vlaneseq
    %v1790 = vshrl.u32 %v1789, 7
    %1792 = vset.pattern.permute.xlu0 %v1790
    %1793 = vperm.xlu0 %1792, %v1788
    %v1794 = vpop.permute.xlu0 %1793
    %v1795 = vperm.slane %v1787, 1
    %v1796 = vlaneseq
    %v1797 = vshrl.u32 %v1796, 7
    %1799 = vset.pattern.permute.xlu0 %v1797
    %1800 = vperm.xlu0 %1799, %v1795
    %v1801 = vpop.permute.xlu0 %1800
    %v1802 = vmul.f32 %v1794, %v1311
    %v1803 = vmul.f32 %v1801, %v1314
    %v1804 = vrot.slane %v1802, 4
    %v1805 = vadd.f32 %v1802, %v1804
    %v1806 = vrot.slane %v1805, 2
    %v1807 = vadd.f32 %v1805, %v1806
    %v1808 = vrot.slane %v1807, 1
    %v1809 = vadd.f32 %v1807, %v1808
    %v1810 = vrot.slane %v1803, 4
    %v1811 = vadd.f32 %v1803, %v1810
    %v1812 = vrot.slane %v1811, 2
    %v1813 = vadd.f32 %v1811, %v1812
    %v1814 = vrot.slane %v1813, 1
    %v1815 = vadd.f32 %v1813, %v1814
    %v1818 = vsel %vm1158, %v1815, %v1809
    %v1820 = vadd.f32 %v1755, %v1818
    %v1821 = vxor.u32 %v1820, 2147483648
    %v1822 = vmul.f32 %v1821, 1.442695
    %v1823 = vpow.pop %v1822
    %v1824 = vadd.f32 %v1823, 1.0
    %v1825 = vrcp.pop %v1824
    %v1826 = vmul.f32 %v1824, %v1825
    %v1827 = vsub.f32 1.0, %v1826
    %v1828 = vmul.f32 %v1825, %v1827
    %v1829 = vadd.f32 %v1825, %v1828
    %vm1830 = vweird.f32 %v1824
    %vm1831 = vweird.f32 %v1825
    %vm1832 = vmor %vm1830, %vm1831
    %v1833 = vsel %vm1832, %v1825, %v1829
    %v1834 = vand.u32 2147483647, %v1824
    %vm1835 = vcmp.eq.f32.partialorder %v1834, 8.507059e+37
    %v1836 = vand.u32 %v1824, 2147483648
    %v1837 = vor.u32 1.1754944e-38, %v1836
    %v1838 = vsel %vm1835, %v1837, %v1833
    %v1839 = vmul.f32 1.0, %v1838
    %v1840 = vtanh.pop %v1820
    %v1841 = vmul.f32 %v1839, %v1717
    %1843 = vrot.lane.b32.xlu0 %v1840, 32
    %v1844 = vpop.permute.xlu0 %1843
    %v1846 = vmul.f32 %v1839, %v1844
    %1848 = vrot.lane.b32.xlu0 %v1846, 32
    %v1849 = vpop.permute.xlu0 %1848
    %v1851 = vadd.f32 %v1841, %v1849
    %v1852 = vtanh.pop %v1851
    %1854 = vrot.lane.b32.xlu0 %v1852, 32
    %v1855 = vpop.permute.xlu0 %1854
    %v1857 = vmul.f32 %v1839, %v1855
    %1859 = vrot.lane.b32.xlu0 %v1857, 64
    %v1860 = vpop.permute.xlu0 %1859
    %s1862 = scalar_lea.vmem [#allocation2], 6
    %1863 = vst.msk [vmem:[%s1862] sm:$0x3] %vm1460, %v1860
    %v1864 = vld [vmem:[#allocation3 + $0x50] sm:$0xff]
    %v1865 = vld [vmem:[#allocation3 + $0x58] sm:$0xff]
    %v1866 = vld [vmem:[#allocation3 + $0x60] sm:$0xff]
    %v1867 = vld [vmem:[#allocation3 + $0x68] sm:$0xff]
    %v1868 = vld [vmem:[#allocation3 + $0x70] sm:$0x1]
    %v1869 = vld [vmem:[#allocation2] sm:$0x3]
    %v1870 = vld [vmem:[#allocation2 + $0x2] sm:$0x3]
    %v1871 = vld [vmem:[#allocation2 + $0x4] sm:$0x3]
    %v1872 = vld [vmem:[#allocation2 + $0x6] sm:$0x3]
    %v1873 = vperm.slane %v1868, 0
    %1878 = vst [vmem:[#allocation1] ss:$4 sm:$0xff] %v1869
    %s1879 = scalar_lea.vmem [#allocation1], 1
    %1880 = vst [vmem:[%s1879] ss:$4 sm:$0xff] %v1870
    %s1881 = scalar_lea.vmem [#allocation1], 2
    %1882 = vst [vmem:[%s1881] ss:$4 sm:$0xff] %v1871
    %s1883 = scalar_lea.vmem [#allocation1], 3
    %1884 = vst [vmem:[%s1883] ss:$4 sm:$0xff] %v1872
    %v1885 = vld.sshfl [vmem:[#allocation1] sm:$0xff pattern:$0x73625140]
    %v1886 = vsel %vm625, %v1885, 0
    %1888 = vmatpush.msra.mxu0 0.0
    %1889 = vmatpush.msra.mxu0 0.0
    %1890 = vmatpush.msra.mxu0 0.0
    %1891 = vmatpush.msra.mxu0 0.0
    %1892 = vmatpush.msra.mxu0 0.0
    %1893 = vmatpush.msra.mxu0 0.0
    %1894 = vmatpush.msra.mxu0 0.0
    %1895 = vmatpush.msra.mxu0 0.0
    %1896 = vmatpush.msra.mxu0 0.0
    %1897 = vmatpush.msra.mxu0 0.0
    %1898 = vmatpush.msra.mxu0 0.0
    %1899 = vmatpush.msra.mxu0 0.0
    %1900 = vmatpush.msra.mxu0 %v1867
    %1901 = vmatpush.msra.mxu0 %v1866
    %1902 = vmatpush.msra.mxu0 %v1865
    %1903 = vmatpush.msra.mxu0 %v1864
    %1904 = vmatmul.f32.gmra.mxu0 %v1886
    %v1905 = vpop.f32.mrf.mxu0
    %v1906 = vadd.f32 %v1873, %v1905
    %1907 = vdwg.mxu0
    %1908 = vst [vmem:[#allocation8] sm:$0xff] %v1906
    // Predicated region
    $region34: #{tpu_custom_call.1} parent=1 // pred_check
      _
    $region35: #{tpu_custom_call.1} parent=1 // pred_check_branch
      %1910 = sbr.rel (0) target = $region37
    $region36: #{tpu_custom_call.1} parent=1 // pred_region
      %1912 = vsyncadd [#allocation5], 0
      %s1914 = sshll.u32 [#allocation8], 4
      %s1915 = int_to_ptr.vmem [resolvable:$true] %s1914
      %s1916 = sshll.u32 %s6, 4
      %s1917 = int_to_ptr.hbm [resolvable:$true] %s1916
      %1919 = dma.vmem_to_hbm [thread:$0]  %s1915, 128, %s1917, [#allocation5]
    $region37: #{tpu_custom_call.1} parent=1 // pred_fallthru
      _
    // Predicated region
    $region38: #{tpu_custom_call.1} parent=1 // pred_check
      _
    $region39: #{tpu_custom_call.1} parent=1 // pred_check_branch
      %1921 = sbr.rel (0) target = $region41
    $region40: #{tpu_custom_call.1} parent=1 // pred_region
      %1923 = dma.done [#allocation5], 128
    $region41: #{tpu_custom_call.1} parent=1 // pred_fallthru
      _
    %1924 = vsyncpa [#allocation4], 1
    %1925 = vsyncpa [#allocation7], 1
    %1926 = vsyncpa [#allocation5], 1

</llo_original>
